<compile_context>
chip_gen: v7x
topology: tpu7x:2x2x1
jax: 0.10.0
libtpu: 0.0.40
codegen_flags: <defaults>
</compile_context>

<pallas_src>
import functools

import jax
import jax.numpy as jnp
from jax import lax
from jax.experimental import pallas as pl
from jax.experimental.pallas import tpu as pltpu


def repblock_kernel(x_ref, wfe_ref, bfe_ref, w1_ref, b1_ref, w2_ref, b2_ref,
                    w3_ref, b3_ref, out_ref, out1_ref, att_ref, *, H, W):
    """Processes one batch element.

    x_ref / out refs: (C, H*W) float32 VMEM blocks (lane-dense flattened image).
    Weight refs: (C_out, 9*C_in) float32 VMEM (tap-major, HWIO flattened).
    Bias refs:   (C, 1) float32 VMEM.
    """
    C, HW = x_ref.shape

    # Column index of every flattened pixel (lane axis) for the dx=+-1 masks.
    fidx = lax.broadcasted_iota(jnp.int32, (1, HW), 1)
    if W & (W - 1) == 0:                       # power-of-two width: cheap AND
        col = jnp.bitwise_and(fidx, W - 1)
    else:                                      # general width: float floor-div
        ff = fidx.astype(jnp.float32)
        col = (ff - jnp.floor(ff / W) * W).astype(jnp.int32)
    mask_l = col >= 1                          # tap needs column w-1
    mask_r = col < (W - 1)                     # tap needs column w+1

    offsets = [(dy, dx) for dy in (-1, 0, 1) for dx in (-1, 0, 1)]

    def tap(v, dy, dx):
        # out[:, h*W+w] = v[:, (h+dy)*W + (w+dx)], zero outside the image.
        # Flat shift + zero fill handles the top/bottom row boundaries; the
        # column masks handle the left/right edges (and the row-wrap of dx).
        s = dy * W + dx
        if s == 0:
            y = v
        elif s > 0:
            y = jnp.concatenate([v[:, s:], jnp.zeros((C, s), v.dtype)], axis=1)
        else:
            y = jnp.concatenate([jnp.zeros((C, -s), v.dtype), v[:, :HW + s]],
                                axis=1)
        if dx == 1:
            y = jnp.where(mask_r, y, 0.0)
        elif dx == -1:
            y = jnp.where(mask_l, y, 0.0)
        return y

    def conv3x3(v, w_ref, b_ref):
        # v: (C, HW) -> (C, HW).  One MXU matmul over the 9*C contracted taps.
        stacked = jnp.concatenate([tap(v, dy, dx) for dy, dx in offsets],
                                  axis=0)                       # (9*C, HW)
        return (jnp.dot(w_ref[...], stacked,
                        preferred_element_type=jnp.float32) + b_ref[...])

    def sigmoid(v):
        return 1.0 / (1.0 + jnp.exp(-v))       # exp on EUP

    def silu(v):
        return v * sigmoid(v)

    x = x_ref[...]
    fe = conv3x3(x, wfe_ref, bfe_ref)          # feature_extractor
    o1 = conv3x3(fe, w1_ref, b1_ref)           # conv_1
    o2 = conv3x3(silu(o1), w2_ref, b2_ref)     # conv_2
    o3 = conv3x3(silu(o2), w3_ref, b3_ref)     # conv_3

    att = sigmoid(o3) - 0.5                    # sim_att
    out_ref[...] = (o3 + fe) * att
    out1_ref[...] = o1
    att_ref[...] = att


def repblock_forward(x_nchw, params):
    """x_nchw: (N, C, H, W) float32.  params: (wfe, bfe, w1, b1, w2, b2, w3, b3)
    with conv weights in HWIO (3, 3, C, C) and biases (C,).  Returns
    (out, out1, sim_att), each (N, C, H, W), matching the PyTorch module."""
    wfe, bfe, w1, b1, w2, b2, w3, b3 = params
    N, C, H, W = x_nchw.shape
    HW = H * W

    # NCHW -> (N, C, H*W): pure row-major reshape (no transpose, no copy).
    x = x_nchw.reshape(N, C, HW).astype(jnp.float32)

    def wmat(w):
        # HWIO (3,3,Cin,Cout) -> (Cout, 9*Cin), column index = (ky*3+kx)*Cin+ci,
        # matching the tap stacking order in the kernel.
        w = w.astype(jnp.float32)
        return jnp.transpose(w, (3, 0, 1, 2)).reshape(w.shape[3], -1)

    def bcol(b):
        return b.astype(jnp.float32).reshape(-1, 1)

    img_spec = pl.BlockSpec((None, C, HW), lambda n: (n, 0, 0))
    w_spec = pl.BlockSpec((C, 9 * C), lambda n: (0, 0))
    b_spec = pl.BlockSpec((C, 1), lambda n: (0, 0))
    out_sd = jax.ShapeDtypeStruct((N, C, HW), jnp.float32)

    fn = pl.pallas_call(
        functools.partial(repblock_kernel, H=H, W=W),
        grid=(N,),
        in_specs=[img_spec, w_spec, b_spec, w_spec, b_spec,
                  w_spec, b_spec, w_spec, b_spec],
        out_specs=(img_spec, img_spec, img_spec),
        out_shape=(out_sd, out_sd, out_sd),
        compiler_params=pltpu.CompilerParams(
            dimension_semantics=("parallel",)),          # megacore sharding
    )
    out, out1, att = fn(x, wmat(wfe), bcol(bfe), wmat(w1), bcol(b1),
                        wmat(w2), bcol(b2), wmat(w3), bcol(b3))
    shp = (N, C, H, W)
    return out.reshape(shp), out1.reshape(shp), att.reshape(shp)


def ref_forward(x_nchw, params):
    """Pure-JAX reference (lax.conv) for numerical validation."""
    wfe, bfe, w1, b1, w2, b2, w3, b3 = params
    x = jnp.transpose(x_nchw, (0, 2, 3, 1)).astype(jnp.float32)

    def conv(v, w, b):
        y = lax.conv_general_dilated(v, w, (1, 1), 'SAME',
                                     dimension_numbers=('NHWC', 'HWIO', 'NHWC'))
        return y + b.reshape(1, 1, 1, -1)

    fe = conv(x, wfe, bfe)
    o1 = conv(fe, w1, b1)
    a1 = o1 * jax.nn.sigmoid(o1)
    o2 = conv(a1, w2, b2)
    a2 = o2 * jax.nn.sigmoid(o2)
    o3 = conv(a2, w3, b3)
    att = jax.nn.sigmoid(o3) - 0.5
    out = (o3 + fe) * att
    to_nchw = lambda t: jnp.transpose(t, (0, 3, 1, 2))
    return to_nchw(out), to_nchw(o1), to_nchw(att)


def init_params(key, n_feat):
    ks = jax.random.split(key, 8)
    def w(k):  # HWIO 3x3 conv weight
        return (0.1 * jax.random.normal(k, (3, 3, n_feat, n_feat))).astype(jnp.float32)
    def b(k):
        return (0.05 * jax.random.normal(k, (n_feat,))).astype(jnp.float32)
    return (w(ks[0]), b(ks[1]), w(ks[2]), b(ks[3]),
            w(ks[4]), b(ks[5]), w(ks[6]), b(ks[7]))


if __name__ == "__main__":
    key = jax.random.PRNGKey(0)
    kx, kp = jax.random.split(key)

    n_feat = 4
    N, H, W = 2, 16, 16
    x = jax.random.normal(kx, (N, n_feat, H, W), dtype=jnp.float32)   # NCHW like PyTorch
    params = init_params(kp, n_feat)

    fwd = jax.jit(repblock_forward)
    out, out1, sim_att = jax.block_until_ready(fwd(x, params))

    # Validate against pure-JAX reference.
    r_out, r_out1, r_att = ref_forward(x, params)
    assert out.shape == (N, n_feat, H, W)
    assert out1.shape == (N, n_feat, H, W)
    assert sim_att.shape == (N, n_feat, H, W)
    assert jnp.allclose(out, r_out, atol=2e-3, rtol=2e-3)
    assert jnp.allclose(out1, r_out1, atol=2e-3, rtol=2e-3)
    assert jnp.allclose(sim_att, r_att, atol=2e-3, rtol=2e-3)

    print("KERNEL_OK")
</pallas_src>

<mosaic_0001>
module attributes {stable_mosaic.version = 11 : i64} {
  func.func @repblock_kernel(%arg0: i32, %arg1: memref<1x4x256xf32, #tpu.memory_space<vmem>>, %arg2: memref<4x36xf32, #tpu.memory_space<vmem>>, %arg3: memref<4x1xf32, #tpu.memory_space<vmem>>, %arg4: memref<4x36xf32, #tpu.memory_space<vmem>>, %arg5: memref<4x1xf32, #tpu.memory_space<vmem>>, %arg6: memref<4x36xf32, #tpu.memory_space<vmem>>, %arg7: memref<4x1xf32, #tpu.memory_space<vmem>>, %arg8: memref<4x36xf32, #tpu.memory_space<vmem>>, %arg9: memref<4x1xf32, #tpu.memory_space<vmem>>, %arg10: memref<1x4x256xf32, #tpu.memory_space<vmem>>, %arg11: memref<1x4x256xf32, #tpu.memory_space<vmem>>, %arg12: memref<1x4x256xf32, #tpu.memory_space<vmem>>) attributes {dimension_semantics = [#tpu.dimension_semantics<parallel>], iteration_bounds = array<i64: 2>, scalar_prefetch = 0 : i64, scratch_operands = 0 : i64, tpu.core_type = #tpu.core_type<tc>, window_params = [{transform_indices = @transform_0, window_bounds = array<i64: 1, 4, 256>}, {pipeline_mode = #tpu.pipeline_mode<synchronous>, transform_indices = @transform_1, window_bounds = array<i64: 4, 36>}, {pipeline_mode = #tpu.pipeline_mode<synchronous>, transform_indices = @transform_2, window_bounds = array<i64: 4, 1>}, {pipeline_mode = #tpu.pipeline_mode<synchronous>, transform_indices = @transform_3, window_bounds = array<i64: 4, 36>}, {pipeline_mode = #tpu.pipeline_mode<synchronous>, transform_indices = @transform_4, window_bounds = array<i64: 4, 1>}, {pipeline_mode = #tpu.pipeline_mode<synchronous>, transform_indices = @transform_5, window_bounds = array<i64: 4, 36>}, {pipeline_mode = #tpu.pipeline_mode<synchronous>, transform_indices = @transform_6, window_bounds = array<i64: 4, 1>}, {pipeline_mode = #tpu.pipeline_mode<synchronous>, transform_indices = @transform_7, window_bounds = array<i64: 4, 36>}, {pipeline_mode = #tpu.pipeline_mode<synchronous>, transform_indices = @transform_8, window_bounds = array<i64: 4, 1>}, {transform_indices = @transform_9, window_bounds = array<i64: 1, 4, 256>}, {transform_indices = @transform_10, window_bounds = array<i64: 1, 4, 256>}, {transform_indices = @transform_11, window_bounds = array<i64: 1, 4, 256>}]} {
    %0 = tpu.iota {dimensions = array<i32: 1>} : vector<1x256xi32>
    %c15_i32 = arith.constant 15 : i32
    %1 = vector.broadcast %c15_i32 : i32 to vector<1x256xi32>
    %2 = arith.andi %0, %1 : vector<1x256xi32>
    %c1_i32 = arith.constant 1 : i32
    %3 = vector.broadcast %c1_i32 : i32 to vector<1x256xi32>
    %4 = arith.cmpi sge, %2, %3 : vector<1x256xi32>
    %c15_i32_0 = arith.constant 15 : i32
    %5 = vector.broadcast %c15_i32_0 : i32 to vector<1x256xi32>
    %6 = arith.cmpi slt, %2, %5 : vector<1x256xi32>
    %c0 = arith.constant 0 : index
    %c0_1 = arith.constant 0 : index
    %c0_2 = arith.constant 0 : index
    %7 = vector.load %arg1[%c0, %c0_1, %c0_2] : memref<1x4x256xf32, #tpu.memory_space<vmem>>, vector<1x4x256xf32>
    %8 = vector.shape_cast %7 : vector<1x4x256xf32> to vector<4x256xf32>
    %cst = arith.constant 0.000000e+00 : f32
    %9 = vector.broadcast %cst : f32 to vector<4x17xf32>
    %10 = vector.extract_strided_slice %8 {offsets = [0, 0], sizes = [4, 239], strides = [1, 1]} : vector<4x256xf32> to vector<4x239xf32>
    %11 = tpu.concatenate %9, %10 in 1 : vector<4x17xf32>, vector<4x239xf32> -> vector<4x256xf32>
    %cst_3 = arith.constant 0.000000e+00 : f32
    %12 = vector.shape_cast %4 : vector<1x256xi1> to vector<1x256xi1>
    %13 = vector.broadcast %12 : vector<1x256xi1> to vector<4x256xi1>
    %14 = vector.broadcast %cst_3 : f32 to vector<4x256xf32>
    %15 = arith.select %13, %11, %14 : vector<4x256xi1>, vector<4x256xf32>
    %cst_4 = arith.constant 0.000000e+00 : f32
    %16 = vector.broadcast %cst_4 : f32 to vector<4x16xf32>
    %17 = vector.extract_strided_slice %8 {offsets = [0, 0], sizes = [4, 240], strides = [1, 1]} : vector<4x256xf32> to vector<4x240xf32>
    %18 = tpu.concatenate %16, %17 in 1 : vector<4x16xf32>, vector<4x240xf32> -> vector<4x256xf32>
    %cst_5 = arith.constant 0.000000e+00 : f32
    %19 = vector.broadcast %cst_5 : f32 to vector<4x15xf32>
    %20 = vector.extract_strided_slice %8 {offsets = [0, 0], sizes = [4, 241], strides = [1, 1]} : vector<4x256xf32> to vector<4x241xf32>
    %21 = tpu.concatenate %19, %20 in 1 : vector<4x15xf32>, vector<4x241xf32> -> vector<4x256xf32>
    %cst_6 = arith.constant 0.000000e+00 : f32
    %22 = vector.shape_cast %6 : vector<1x256xi1> to vector<1x256xi1>
    %23 = vector.broadcast %22 : vector<1x256xi1> to vector<4x256xi1>
    %24 = vector.broadcast %cst_6 : f32 to vector<4x256xf32>
    %25 = arith.select %23, %21, %24 : vector<4x256xi1>, vector<4x256xf32>
    %cst_7 = arith.constant 0.000000e+00 : f32
    %26 = vector.broadcast %cst_7 : f32 to vector<4x1xf32>
    %27 = vector.extract_strided_slice %8 {offsets = [0, 0], sizes = [4, 255], strides = [1, 1]} : vector<4x256xf32> to vector<4x255xf32>
    %28 = tpu.concatenate %26, %27 in 1 : vector<4x1xf32>, vector<4x255xf32> -> vector<4x256xf32>
    %cst_8 = arith.constant 0.000000e+00 : f32
    %29 = vector.shape_cast %4 : vector<1x256xi1> to vector<1x256xi1>
    %30 = vector.broadcast %29 : vector<1x256xi1> to vector<4x256xi1>
    %31 = vector.broadcast %cst_8 : f32 to vector<4x256xf32>
    %32 = arith.select %30, %28, %31 : vector<4x256xi1>, vector<4x256xf32>
    %33 = vector.extract_strided_slice %8 {offsets = [0, 1], sizes = [4, 255], strides = [1, 1]} : vector<4x256xf32> to vector<4x255xf32>
    %cst_9 = arith.constant 0.000000e+00 : f32
    %34 = vector.broadcast %cst_9 : f32 to vector<4x1xf32>
    %35 = tpu.concatenate %33, %34 in 1 : vector<4x255xf32>, vector<4x1xf32> -> vector<4x256xf32>
    %cst_10 = arith.constant 0.000000e+00 : f32
    %36 = vector.shape_cast %6 : vector<1x256xi1> to vector<1x256xi1>
    %37 = vector.broadcast %36 : vector<1x256xi1> to vector<4x256xi1>
    %38 = vector.broadcast %cst_10 : f32 to vector<4x256xf32>
    %39 = arith.select %37, %35, %38 : vector<4x256xi1>, vector<4x256xf32>
    %40 = vector.extract_strided_slice %8 {offsets = [0, 15], sizes = [4, 241], strides = [1, 1]} : vector<4x256xf32> to vector<4x241xf32>
    %cst_11 = arith.constant 0.000000e+00 : f32
    %41 = vector.broadcast %cst_11 : f32 to vector<4x15xf32>
    %42 = tpu.concatenate %40, %41 in 1 : vector<4x241xf32>, vector<4x15xf32> -> vector<4x256xf32>
    %cst_12 = arith.constant 0.000000e+00 : f32
    %43 = vector.shape_cast %4 : vector<1x256xi1> to vector<1x256xi1>
    %44 = vector.broadcast %43 : vector<1x256xi1> to vector<4x256xi1>
    %45 = vector.broadcast %cst_12 : f32 to vector<4x256xf32>
    %46 = arith.select %44, %42, %45 : vector<4x256xi1>, vector<4x256xf32>
    %47 = vector.extract_strided_slice %8 {offsets = [0, 16], sizes = [4, 240], strides = [1, 1]} : vector<4x256xf32> to vector<4x240xf32>
    %cst_13 = arith.constant 0.000000e+00 : f32
    %48 = vector.broadcast %cst_13 : f32 to vector<4x16xf32>
    %49 = tpu.concatenate %47, %48 in 1 : vector<4x240xf32>, vector<4x16xf32> -> vector<4x256xf32>
    %50 = vector.extract_strided_slice %8 {offsets = [0, 17], sizes = [4, 239], strides = [1, 1]} : vector<4x256xf32> to vector<4x239xf32>
    %cst_14 = arith.constant 0.000000e+00 : f32
    %51 = vector.broadcast %cst_14 : f32 to vector<4x17xf32>
    %52 = tpu.concatenate %50, %51 in 1 : vector<4x239xf32>, vector<4x17xf32> -> vector<4x256xf32>
    %cst_15 = arith.constant 0.000000e+00 : f32
    %53 = vector.shape_cast %6 : vector<1x256xi1> to vector<1x256xi1>
    %54 = vector.broadcast %53 : vector<1x256xi1> to vector<4x256xi1>
    %55 = vector.broadcast %cst_15 : f32 to vector<4x256xf32>
    %56 = arith.select %54, %52, %55 : vector<4x256xi1>, vector<4x256xf32>
    %57 = tpu.concatenate %15, %18, %25, %32, %8, %39, %46, %49, %56 in 0 : vector<4x256xf32>, vector<4x256xf32>, vector<4x256xf32>, vector<4x256xf32>, vector<4x256xf32>, vector<4x256xf32>, vector<4x256xf32>, vector<4x256xf32>, vector<4x256xf32> -> vector<36x256xf32>
    %c0_16 = arith.constant 0 : index
    %c0_17 = arith.constant 0 : index
    %58 = vector.load %arg2[%c0_16, %c0_17] : memref<4x36xf32, #tpu.memory_space<vmem>>, vector<4x36xf32>
    %cst_18 = arith.constant dense<0.000000e+00> : vector<4x256xf32>
    %59 = tpu.matmul %58, %57, %cst_18 {dimension_numbers = #tpu.dot_dimension_numbers<[1], [0], [0], [1], [0, 0, 1, 1], [], []>} : vector<4x36xf32>, vector<36x256xf32>, vector<4x256xf32> -> vector<4x256xf32>
    %c0_19 = arith.constant 0 : index
    %c0_20 = arith.constant 0 : index
    %60 = vector.load %arg3[%c0_19, %c0_20] : memref<4x1xf32, #tpu.memory_space<vmem>>, vector<4x1xf32>
    %61 = vector.broadcast %60 : vector<4x1xf32> to vector<4x256xf32>
    %62 = arith.addf %59, %61 : vector<4x256xf32>
    %cst_21 = arith.constant 0.000000e+00 : f32
    %63 = vector.broadcast %cst_21 : f32 to vector<4x17xf32>
    %64 = vector.extract_strided_slice %62 {offsets = [0, 0], sizes = [4, 239], strides = [1, 1]} : vector<4x256xf32> to vector<4x239xf32>
    %65 = tpu.concatenate %63, %64 in 1 : vector<4x17xf32>, vector<4x239xf32> -> vector<4x256xf32>
    %cst_22 = arith.constant 0.000000e+00 : f32
    %66 = vector.shape_cast %4 : vector<1x256xi1> to vector<1x256xi1>
    %67 = vector.broadcast %66 : vector<1x256xi1> to vector<4x256xi1>
    %68 = vector.broadcast %cst_22 : f32 to vector<4x256xf32>
    %69 = arith.select %67, %65, %68 : vector<4x256xi1>, vector<4x256xf32>
    %cst_23 = arith.constant 0.000000e+00 : f32
    %70 = vector.broadcast %cst_23 : f32 to vector<4x16xf32>
    %71 = vector.extract_strided_slice %62 {offsets = [0, 0], sizes = [4, 240], strides = [1, 1]} : vector<4x256xf32> to vector<4x240xf32>
    %72 = tpu.concatenate %70, %71 in 1 : vector<4x16xf32>, vector<4x240xf32> -> vector<4x256xf32>
    %cst_24 = arith.constant 0.000000e+00 : f32
    %73 = vector.broadcast %cst_24 : f32 to vector<4x15xf32>
    %74 = vector.extract_strided_slice %62 {offsets = [0, 0], sizes = [4, 241], strides = [1, 1]} : vector<4x256xf32> to vector<4x241xf32>
    %75 = tpu.concatenate %73, %74 in 1 : vector<4x15xf32>, vector<4x241xf32> -> vector<4x256xf32>
    %cst_25 = arith.constant 0.000000e+00 : f32
    %76 = vector.shape_cast %6 : vector<1x256xi1> to vector<1x256xi1>
    %77 = vector.broadcast %76 : vector<1x256xi1> to vector<4x256xi1>
    %78 = vector.broadcast %cst_25 : f32 to vector<4x256xf32>
    %79 = arith.select %77, %75, %78 : vector<4x256xi1>, vector<4x256xf32>
    %cst_26 = arith.constant 0.000000e+00 : f32
    %80 = vector.broadcast %cst_26 : f32 to vector<4x1xf32>
    %81 = vector.extract_strided_slice %62 {offsets = [0, 0], sizes = [4, 255], strides = [1, 1]} : vector<4x256xf32> to vector<4x255xf32>
    %82 = tpu.concatenate %80, %81 in 1 : vector<4x1xf32>, vector<4x255xf32> -> vector<4x256xf32>
    %cst_27 = arith.constant 0.000000e+00 : f32
    %83 = vector.shape_cast %4 : vector<1x256xi1> to vector<1x256xi1>
    %84 = vector.broadcast %83 : vector<1x256xi1> to vector<4x256xi1>
    %85 = vector.broadcast %cst_27 : f32 to vector<4x256xf32>
    %86 = arith.select %84, %82, %85 : vector<4x256xi1>, vector<4x256xf32>
    %87 = vector.extract_strided_slice %62 {offsets = [0, 1], sizes = [4, 255], strides = [1, 1]} : vector<4x256xf32> to vector<4x255xf32>
    %cst_28 = arith.constant 0.000000e+00 : f32
    %88 = vector.broadcast %cst_28 : f32 to vector<4x1xf32>
    %89 = tpu.concatenate %87, %88 in 1 : vector<4x255xf32>, vector<4x1xf32> -> vector<4x256xf32>
    %cst_29 = arith.constant 0.000000e+00 : f32
    %90 = vector.shape_cast %6 : vector<1x256xi1> to vector<1x256xi1>
    %91 = vector.broadcast %90 : vector<1x256xi1> to vector<4x256xi1>
    %92 = vector.broadcast %cst_29 : f32 to vector<4x256xf32>
    %93 = arith.select %91, %89, %92 : vector<4x256xi1>, vector<4x256xf32>
    %94 = vector.extract_strided_slice %62 {offsets = [0, 15], sizes = [4, 241], strides = [1, 1]} : vector<4x256xf32> to vector<4x241xf32>
    %cst_30 = arith.constant 0.000000e+00 : f32
    %95 = vector.broadcast %cst_30 : f32 to vector<4x15xf32>
    %96 = tpu.concatenate %94, %95 in 1 : vector<4x241xf32>, vector<4x15xf32> -> vector<4x256xf32>
    %cst_31 = arith.constant 0.000000e+00 : f32
    %97 = vector.shape_cast %4 : vector<1x256xi1> to vector<1x256xi1>
    %98 = vector.broadcast %97 : vector<1x256xi1> to vector<4x256xi1>
    %99 = vector.broadcast %cst_31 : f32 to vector<4x256xf32>
    %100 = arith.select %98, %96, %99 : vector<4x256xi1>, vector<4x256xf32>
    %101 = vector.extract_strided_slice %62 {offsets = [0, 16], sizes = [4, 240], strides = [1, 1]} : vector<4x256xf32> to vector<4x240xf32>
    %cst_32 = arith.constant 0.000000e+00 : f32
    %102 = vector.broadcast %cst_32 : f32 to vector<4x16xf32>
    %103 = tpu.concatenate %101, %102 in 1 : vector<4x240xf32>, vector<4x16xf32> -> vector<4x256xf32>
    %104 = vector.extract_strided_slice %62 {offsets = [0, 17], sizes = [4, 239], strides = [1, 1]} : vector<4x256xf32> to vector<4x239xf32>
    %cst_33 = arith.constant 0.000000e+00 : f32
    %105 = vector.broadcast %cst_33 : f32 to vector<4x17xf32>
    %106 = tpu.concatenate %104, %105 in 1 : vector<4x239xf32>, vector<4x17xf32> -> vector<4x256xf32>
    %cst_34 = arith.constant 0.000000e+00 : f32
    %107 = vector.shape_cast %6 : vector<1x256xi1> to vector<1x256xi1>
    %108 = vector.broadcast %107 : vector<1x256xi1> to vector<4x256xi1>
    %109 = vector.broadcast %cst_34 : f32 to vector<4x256xf32>
    %110 = arith.select %108, %106, %109 : vector<4x256xi1>, vector<4x256xf32>
    %111 = tpu.concatenate %69, %72, %79, %86, %62, %93, %100, %103, %110 in 0 : vector<4x256xf32>, vector<4x256xf32>, vector<4x256xf32>, vector<4x256xf32>, vector<4x256xf32>, vector<4x256xf32>, vector<4x256xf32>, vector<4x256xf32>, vector<4x256xf32> -> vector<36x256xf32>
    %c0_35 = arith.constant 0 : index
    %c0_36 = arith.constant 0 : index
    %112 = vector.load %arg4[%c0_35, %c0_36] : memref<4x36xf32, #tpu.memory_space<vmem>>, vector<4x36xf32>
    %cst_37 = arith.constant dense<0.000000e+00> : vector<4x256xf32>
    %113 = tpu.matmul %112, %111, %cst_37 {dimension_numbers = #tpu.dot_dimension_numbers<[1], [0], [0], [1], [0, 0, 1, 1], [], []>} : vector<4x36xf32>, vector<36x256xf32>, vector<4x256xf32> -> vector<4x256xf32>
    %c0_38 = arith.constant 0 : index
    %c0_39 = arith.constant 0 : index
    %114 = vector.load %arg5[%c0_38, %c0_39] : memref<4x1xf32, #tpu.memory_space<vmem>>, vector<4x1xf32>
    %115 = vector.broadcast %114 : vector<4x1xf32> to vector<4x256xf32>
    %116 = arith.addf %113, %115 : vector<4x256xf32>
    %cst_40 = arith.constant 0.000000e+00 : f32
    %117 = vector.broadcast %cst_40 : f32 to vector<4x256xf32>
    %118 = arith.subf %117, %116 : vector<4x256xf32>
    %119 = math.exp %118 : vector<4x256xf32>
    %cst_41 = arith.constant 1.000000e+00 : f32
    %120 = vector.broadcast %cst_41 : f32 to vector<4x256xf32>
    %121 = arith.addf %120, %119 : vector<4x256xf32>
    %cst_42 = arith.constant 1.000000e+00 : f32
    %122 = vector.broadcast %cst_42 : f32 to vector<4x256xf32>
    %123 = arith.divf %122, %121 : vector<4x256xf32>
    %124 = arith.mulf %116, %123 : vector<4x256xf32>
    %cst_43 = arith.constant 0.000000e+00 : f32
    %125 = vector.broadcast %cst_43 : f32 to vector<4x17xf32>
    %126 = vector.extract_strided_slice %124 {offsets = [0, 0], sizes = [4, 239], strides = [1, 1]} : vector<4x256xf32> to vector<4x239xf32>
    %127 = tpu.concatenate %125, %126 in 1 : vector<4x17xf32>, vector<4x239xf32> -> vector<4x256xf32>
    %cst_44 = arith.constant 0.000000e+00 : f32
    %128 = vector.shape_cast %4 : vector<1x256xi1> to vector<1x256xi1>
    %129 = vector.broadcast %128 : vector<1x256xi1> to vector<4x256xi1>
    %130 = vector.broadcast %cst_44 : f32 to vector<4x256xf32>
    %131 = arith.select %129, %127, %130 : vector<4x256xi1>, vector<4x256xf32>
    %cst_45 = arith.constant 0.000000e+00 : f32
    %132 = vector.broadcast %cst_45 : f32 to vector<4x16xf32>
    %133 = vector.extract_strided_slice %124 {offsets = [0, 0], sizes = [4, 240], strides = [1, 1]} : vector<4x256xf32> to vector<4x240xf32>
    %134 = tpu.concatenate %132, %133 in 1 : vector<4x16xf32>, vector<4x240xf32> -> vector<4x256xf32>
    %cst_46 = arith.constant 0.000000e+00 : f32
    %135 = vector.broadcast %cst_46 : f32 to vector<4x15xf32>
    %136 = vector.extract_strided_slice %124 {offsets = [0, 0], sizes = [4, 241], strides = [1, 1]} : vector<4x256xf32> to vector<4x241xf32>
    %137 = tpu.concatenate %135, %136 in 1 : vector<4x15xf32>, vector<4x241xf32> -> vector<4x256xf32>
    %cst_47 = arith.constant 0.000000e+00 : f32
    %138 = vector.shape_cast %6 : vector<1x256xi1> to vector<1x256xi1>
    %139 = vector.broadcast %138 : vector<1x256xi1> to vector<4x256xi1>
    %140 = vector.broadcast %cst_47 : f32 to vector<4x256xf32>
    %141 = arith.select %139, %137, %140 : vector<4x256xi1>, vector<4x256xf32>
    %cst_48 = arith.constant 0.000000e+00 : f32
    %142 = vector.broadcast %cst_48 : f32 to vector<4x1xf32>
    %143 = vector.extract_strided_slice %124 {offsets = [0, 0], sizes = [4, 255], strides = [1, 1]} : vector<4x256xf32> to vector<4x255xf32>
    %144 = tpu.concatenate %142, %143 in 1 : vector<4x1xf32>, vector<4x255xf32> -> vector<4x256xf32>
    %cst_49 = arith.constant 0.000000e+00 : f32
    %145 = vector.shape_cast %4 : vector<1x256xi1> to vector<1x256xi1>
    %146 = vector.broadcast %145 : vector<1x256xi1> to vector<4x256xi1>
    %147 = vector.broadcast %cst_49 : f32 to vector<4x256xf32>
    %148 = arith.select %146, %144, %147 : vector<4x256xi1>, vector<4x256xf32>
    %149 = vector.extract_strided_slice %124 {offsets = [0, 1], sizes = [4, 255], strides = [1, 1]} : vector<4x256xf32> to vector<4x255xf32>
    %cst_50 = arith.constant 0.000000e+00 : f32
    %150 = vector.broadcast %cst_50 : f32 to vector<4x1xf32>
    %151 = tpu.concatenate %149, %150 in 1 : vector<4x255xf32>, vector<4x1xf32> -> vector<4x256xf32>
    %cst_51 = arith.constant 0.000000e+00 : f32
    %152 = vector.shape_cast %6 : vector<1x256xi1> to vector<1x256xi1>
    %153 = vector.broadcast %152 : vector<1x256xi1> to vector<4x256xi1>
    %154 = vector.broadcast %cst_51 : f32 to vector<4x256xf32>
    %155 = arith.select %153, %151, %154 : vector<4x256xi1>, vector<4x256xf32>
    %156 = vector.extract_strided_slice %124 {offsets = [0, 15], sizes = [4, 241], strides = [1, 1]} : vector<4x256xf32> to vector<4x241xf32>
    %cst_52 = arith.constant 0.000000e+00 : f32
    %157 = vector.broadcast %cst_52 : f32 to vector<4x15xf32>
    %158 = tpu.concatenate %156, %157 in 1 : vector<4x241xf32>, vector<4x15xf32> -> vector<4x256xf32>
    %cst_53 = arith.constant 0.000000e+00 : f32
    %159 = vector.shape_cast %4 : vector<1x256xi1> to vector<1x256xi1>
    %160 = vector.broadcast %159 : vector<1x256xi1> to vector<4x256xi1>
    %161 = vector.broadcast %cst_53 : f32 to vector<4x256xf32>
    %162 = arith.select %160, %158, %161 : vector<4x256xi1>, vector<4x256xf32>
    %163 = vector.extract_strided_slice %124 {offsets = [0, 16], sizes = [4, 240], strides = [1, 1]} : vector<4x256xf32> to vector<4x240xf32>
    %cst_54 = arith.constant 0.000000e+00 : f32
    %164 = vector.broadcast %cst_54 : f32 to vector<4x16xf32>
    %165 = tpu.concatenate %163, %164 in 1 : vector<4x240xf32>, vector<4x16xf32> -> vector<4x256xf32>
    %166 = vector.extract_strided_slice %124 {offsets = [0, 17], sizes = [4, 239], strides = [1, 1]} : vector<4x256xf32> to vector<4x239xf32>
    %cst_55 = arith.constant 0.000000e+00 : f32
    %167 = vector.broadcast %cst_55 : f32 to vector<4x17xf32>
    %168 = tpu.concatenate %166, %167 in 1 : vector<4x239xf32>, vector<4x17xf32> -> vector<4x256xf32>
    %cst_56 = arith.constant 0.000000e+00 : f32
    %169 = vector.shape_cast %6 : vector<1x256xi1> to vector<1x256xi1>
    %170 = vector.broadcast %169 : vector<1x256xi1> to vector<4x256xi1>
    %171 = vector.broadcast %cst_56 : f32 to vector<4x256xf32>
    %172 = arith.select %170, %168, %171 : vector<4x256xi1>, vector<4x256xf32>
    %173 = tpu.concatenate %131, %134, %141, %148, %124, %155, %162, %165, %172 in 0 : vector<4x256xf32>, vector<4x256xf32>, vector<4x256xf32>, vector<4x256xf32>, vector<4x256xf32>, vector<4x256xf32>, vector<4x256xf32>, vector<4x256xf32>, vector<4x256xf32> -> vector<36x256xf32>
    %c0_57 = arith.constant 0 : index
    %c0_58 = arith.constant 0 : index
    %174 = vector.load %arg6[%c0_57, %c0_58] : memref<4x36xf32, #tpu.memory_space<vmem>>, vector<4x36xf32>
    %cst_59 = arith.constant dense<0.000000e+00> : vector<4x256xf32>
    %175 = tpu.matmul %174, %173, %cst_59 {dimension_numbers = #tpu.dot_dimension_numbers<[1], [0], [0], [1], [0, 0, 1, 1], [], []>} : vector<4x36xf32>, vector<36x256xf32>, vector<4x256xf32> -> vector<4x256xf32>
    %c0_60 = arith.constant 0 : index
    %c0_61 = arith.constant 0 : index
    %176 = vector.load %arg7[%c0_60, %c0_61] : memref<4x1xf32, #tpu.memory_space<vmem>>, vector<4x1xf32>
    %177 = vector.broadcast %176 : vector<4x1xf32> to vector<4x256xf32>
    %178 = arith.addf %175, %177 : vector<4x256xf32>
    %cst_62 = arith.constant 0.000000e+00 : f32
    %179 = vector.broadcast %cst_62 : f32 to vector<4x256xf32>
    %180 = arith.subf %179, %178 : vector<4x256xf32>
    %181 = math.exp %180 : vector<4x256xf32>
    %cst_63 = arith.constant 1.000000e+00 : f32
    %182 = vector.broadcast %cst_63 : f32 to vector<4x256xf32>
    %183 = arith.addf %182, %181 : vector<4x256xf32>
    %cst_64 = arith.constant 1.000000e+00 : f32
    %184 = vector.broadcast %cst_64 : f32 to vector<4x256xf32>
    %185 = arith.divf %184, %183 : vector<4x256xf32>
    %186 = arith.mulf %178, %185 : vector<4x256xf32>
    %cst_65 = arith.constant 0.000000e+00 : f32
    %187 = vector.broadcast %cst_65 : f32 to vector<4x17xf32>
    %188 = vector.extract_strided_slice %186 {offsets = [0, 0], sizes = [4, 239], strides = [1, 1]} : vector<4x256xf32> to vector<4x239xf32>
    %189 = tpu.concatenate %187, %188 in 1 : vector<4x17xf32>, vector<4x239xf32> -> vector<4x256xf32>
    %cst_66 = arith.constant 0.000000e+00 : f32
    %190 = vector.shape_cast %4 : vector<1x256xi1> to vector<1x256xi1>
    %191 = vector.broadcast %190 : vector<1x256xi1> to vector<4x256xi1>
    %192 = vector.broadcast %cst_66 : f32 to vector<4x256xf32>
    %193 = arith.select %191, %189, %192 : vector<4x256xi1>, vector<4x256xf32>
    %cst_67 = arith.constant 0.000000e+00 : f32
    %194 = vector.broadcast %cst_67 : f32 to vector<4x16xf32>
    %195 = vector.extract_strided_slice %186 {offsets = [0, 0], sizes = [4, 240], strides = [1, 1]} : vector<4x256xf32> to vector<4x240xf32>
    %196 = tpu.concatenate %194, %195 in 1 : vector<4x16xf32>, vector<4x240xf32> -> vector<4x256xf32>
    %cst_68 = arith.constant 0.000000e+00 : f32
    %197 = vector.broadcast %cst_68 : f32 to vector<4x15xf32>
    %198 = vector.extract_strided_slice %186 {offsets = [0, 0], sizes = [4, 241], strides = [1, 1]} : vector<4x256xf32> to vector<4x241xf32>
    %199 = tpu.concatenate %197, %198 in 1 : vector<4x15xf32>, vector<4x241xf32> -> vector<4x256xf32>
    %cst_69 = arith.constant 0.000000e+00 : f32
    %200 = vector.shape_cast %6 : vector<1x256xi1> to vector<1x256xi1>
    %201 = vector.broadcast %200 : vector<1x256xi1> to vector<4x256xi1>
    %202 = vector.broadcast %cst_69 : f32 to vector<4x256xf32>
    %203 = arith.select %201, %199, %202 : vector<4x256xi1>, vector<4x256xf32>
    %cst_70 = arith.constant 0.000000e+00 : f32
    %204 = vector.broadcast %cst_70 : f32 to vector<4x1xf32>
    %205 = vector.extract_strided_slice %186 {offsets = [0, 0], sizes = [4, 255], strides = [1, 1]} : vector<4x256xf32> to vector<4x255xf32>
    %206 = tpu.concatenate %204, %205 in 1 : vector<4x1xf32>, vector<4x255xf32> -> vector<4x256xf32>
    %cst_71 = arith.constant 0.000000e+00 : f32
    %207 = vector.shape_cast %4 : vector<1x256xi1> to vector<1x256xi1>
    %208 = vector.broadcast %207 : vector<1x256xi1> to vector<4x256xi1>
    %209 = vector.broadcast %cst_71 : f32 to vector<4x256xf32>
    %210 = arith.select %208, %206, %209 : vector<4x256xi1>, vector<4x256xf32>
    %211 = vector.extract_strided_slice %186 {offsets = [0, 1], sizes = [4, 255], strides = [1, 1]} : vector<4x256xf32> to vector<4x255xf32>
    %cst_72 = arith.constant 0.000000e+00 : f32
    %212 = vector.broadcast %cst_72 : f32 to vector<4x1xf32>
    %213 = tpu.concatenate %211, %212 in 1 : vector<4x255xf32>, vector<4x1xf32> -> vector<4x256xf32>
    %cst_73 = arith.constant 0.000000e+00 : f32
    %214 = vector.shape_cast %6 : vector<1x256xi1> to vector<1x256xi1>
    %215 = vector.broadcast %214 : vector<1x256xi1> to vector<4x256xi1>
    %216 = vector.broadcast %cst_73 : f32 to vector<4x256xf32>
    %217 = arith.select %215, %213, %216 : vector<4x256xi1>, vector<4x256xf32>
    %218 = vector.extract_strided_slice %186 {offsets = [0, 15], sizes = [4, 241], strides = [1, 1]} : vector<4x256xf32> to vector<4x241xf32>
    %cst_74 = arith.constant 0.000000e+00 : f32
    %219 = vector.broadcast %cst_74 : f32 to vector<4x15xf32>
    %220 = tpu.concatenate %218, %219 in 1 : vector<4x241xf32>, vector<4x15xf32> -> vector<4x256xf32>
    %cst_75 = arith.constant 0.000000e+00 : f32
    %221 = vector.shape_cast %4 : vector<1x256xi1> to vector<1x256xi1>
    %222 = vector.broadcast %221 : vector<1x256xi1> to vector<4x256xi1>
    %223 = vector.broadcast %cst_75 : f32 to vector<4x256xf32>
    %224 = arith.select %222, %220, %223 : vector<4x256xi1>, vector<4x256xf32>
    %225 = vector.extract_strided_slice %186 {offsets = [0, 16], sizes = [4, 240], strides = [1, 1]} : vector<4x256xf32> to vector<4x240xf32>
    %cst_76 = arith.constant 0.000000e+00 : f32
    %226 = vector.broadcast %cst_76 : f32 to vector<4x16xf32>
    %227 = tpu.concatenate %225, %226 in 1 : vector<4x240xf32>, vector<4x16xf32> -> vector<4x256xf32>
    %228 = vector.extract_strided_slice %186 {offsets = [0, 17], sizes = [4, 239], strides = [1, 1]} : vector<4x256xf32> to vector<4x239xf32>
    %cst_77 = arith.constant 0.000000e+00 : f32
    %229 = vector.broadcast %cst_77 : f32 to vector<4x17xf32>
    %230 = tpu.concatenate %228, %229 in 1 : vector<4x239xf32>, vector<4x17xf32> -> vector<4x256xf32>
    %cst_78 = arith.constant 0.000000e+00 : f32
    %231 = vector.shape_cast %6 : vector<1x256xi1> to vector<1x256xi1>
    %232 = vector.broadcast %231 : vector<1x256xi1> to vector<4x256xi1>
    %233 = vector.broadcast %cst_78 : f32 to vector<4x256xf32>
    %234 = arith.select %232, %230, %233 : vector<4x256xi1>, vector<4x256xf32>
    %235 = tpu.concatenate %193, %196, %203, %210, %186, %217, %224, %227, %234 in 0 : vector<4x256xf32>, vector<4x256xf32>, vector<4x256xf32>, vector<4x256xf32>, vector<4x256xf32>, vector<4x256xf32>, vector<4x256xf32>, vector<4x256xf32>, vector<4x256xf32> -> vector<36x256xf32>
    %c0_79 = arith.constant 0 : index
    %c0_80 = arith.constant 0 : index
    %236 = vector.load %arg8[%c0_79, %c0_80] : memref<4x36xf32, #tpu.memory_space<vmem>>, vector<4x36xf32>
    %cst_81 = arith.constant dense<0.000000e+00> : vector<4x256xf32>
    %237 = tpu.matmul %236, %235, %cst_81 {dimension_numbers = #tpu.dot_dimension_numbers<[1], [0], [0], [1], [0, 0, 1, 1], [], []>} : vector<4x36xf32>, vector<36x256xf32>, vector<4x256xf32> -> vector<4x256xf32>
    %c0_82 = arith.constant 0 : index
    %c0_83 = arith.constant 0 : index
    %238 = vector.load %arg9[%c0_82, %c0_83] : memref<4x1xf32, #tpu.memory_space<vmem>>, vector<4x1xf32>
    %239 = vector.broadcast %238 : vector<4x1xf32> to vector<4x256xf32>
    %240 = arith.addf %237, %239 : vector<4x256xf32>
    %cst_84 = arith.constant 0.000000e+00 : f32
    %241 = vector.broadcast %cst_84 : f32 to vector<4x256xf32>
    %242 = arith.subf %241, %240 : vector<4x256xf32>
    %243 = math.exp %242 : vector<4x256xf32>
    %cst_85 = arith.constant 1.000000e+00 : f32
    %244 = vector.broadcast %cst_85 : f32 to vector<4x256xf32>
    %245 = arith.addf %244, %243 : vector<4x256xf32>
    %cst_86 = arith.constant 1.000000e+00 : f32
    %246 = vector.broadcast %cst_86 : f32 to vector<4x256xf32>
    %247 = arith.divf %246, %245 : vector<4x256xf32>
    %cst_87 = arith.constant 5.000000e-01 : f32
    %248 = vector.broadcast %cst_87 : f32 to vector<4x256xf32>
    %249 = arith.subf %247, %248 : vector<4x256xf32>
    %250 = arith.addf %240, %62 : vector<4x256xf32>
    %251 = arith.mulf %250, %249 : vector<4x256xf32>
    %c0_88 = arith.constant 0 : index
    %c0_89 = arith.constant 0 : index
    %c0_90 = arith.constant 0 : index
    %252 = vector.load %arg10[%c0_88, %c0_89, %c0_90] : memref<1x4x256xf32, #tpu.memory_space<vmem>>, vector<1x4x256xf32>
    %253 = vector.shape_cast %252 : vector<1x4x256xf32> to vector<4x256xf32>
    %254 = vector.shape_cast %251 : vector<4x256xf32> to vector<1x4x256xf32>
    tpu.vector_store %arg10[%c0_88, %c0_89, %c0_90], %254 {strides = array<i32>} : memref<1x4x256xf32, #tpu.memory_space<vmem>>, vector<1x4x256xf32>,
    %c0_91 = arith.constant 0 : index
    %c0_92 = arith.constant 0 : index
    %c0_93 = arith.constant 0 : index
    %255 = vector.load %arg11[%c0_91, %c0_92, %c0_93] : memref<1x4x256xf32, #tpu.memory_space<vmem>>, vector<1x4x256xf32>
    %256 = vector.shape_cast %255 : vector<1x4x256xf32> to vector<4x256xf32>
    %257 = vector.shape_cast %116 : vector<4x256xf32> to vector<1x4x256xf32>
    tpu.vector_store %arg11[%c0_91, %c0_92, %c0_93], %257 {strides = array<i32>} : memref<1x4x256xf32, #tpu.memory_space<vmem>>, vector<1x4x256xf32>,
    %c0_94 = arith.constant 0 : index
    %c0_95 = arith.constant 0 : index
    %c0_96 = arith.constant 0 : index
    %258 = vector.load %arg12[%c0_94, %c0_95, %c0_96] : memref<1x4x256xf32, #tpu.memory_space<vmem>>, vector<1x4x256xf32>
    %259 = vector.shape_cast %258 : vector<1x4x256xf32> to vector<4x256xf32>
    %260 = vector.shape_cast %249 : vector<4x256xf32> to vector<1x4x256xf32>
    tpu.vector_store %arg12[%c0_94, %c0_95, %c0_96], %260 {strides = array<i32>} : memref<1x4x256xf32, #tpu.memory_space<vmem>>, vector<1x4x256xf32>,
    return
  }
  func.func @transform_0(%arg0: i32) -> (i32, i32, i32) {
    %c0_i32 = arith.constant 0 : i32
    %c0_i32_0 = arith.constant 0 : i32
    %c0_i32_1 = arith.constant 0 : i32
    return %arg0, %c0_i32, %c0_i32_0 : i32, i32, i32
  }
  func.func @transform_1(%arg0: i32) -> (i32, i32) {
    %c0_i32 = arith.constant 0 : i32
    %c0_i32_0 = arith.constant 0 : i32
    %c0_i32_1 = arith.constant 0 : i32
    return %c0_i32, %c0_i32_0 : i32, i32
  }
  func.func @transform_2(%arg0: i32) -> (i32, i32) {
    %c0_i32 = arith.constant 0 : i32
    %c0_i32_0 = arith.constant 0 : i32
    %c0_i32_1 = arith.constant 0 : i32
    return %c0_i32, %c0_i32_0 : i32, i32
  }
  func.func @transform_3(%arg0: i32) -> (i32, i32) {
    %c0_i32 = arith.constant 0 : i32
    %c0_i32_0 = arith.constant 0 : i32
    %c0_i32_1 = arith.constant 0 : i32
    return %c0_i32, %c0_i32_0 : i32, i32
  }
  func.func @transform_4(%arg0: i32) -> (i32, i32) {
    %c0_i32 = arith.constant 0 : i32
    %c0_i32_0 = arith.constant 0 : i32
    %c0_i32_1 = arith.constant 0 : i32
    return %c0_i32, %c0_i32_0 : i32, i32
  }
  func.func @transform_5(%arg0: i32) -> (i32, i32) {
    %c0_i32 = arith.constant 0 : i32
    %c0_i32_0 = arith.constant 0 : i32
    %c0_i32_1 = arith.constant 0 : i32
    return %c0_i32, %c0_i32_0 : i32, i32
  }
  func.func @transform_6(%arg0: i32) -> (i32, i32) {
    %c0_i32 = arith.constant 0 : i32
    %c0_i32_0 = arith.constant 0 : i32
    %c0_i32_1 = arith.constant 0 : i32
    return %c0_i32, %c0_i32_0 : i32, i32
  }
  func.func @transform_7(%arg0: i32) -> (i32, i32) {
    %c0_i32 = arith.constant 0 : i32
    %c0_i32_0 = arith.constant 0 : i32
    %c0_i32_1 = arith.constant 0 : i32
    return %c0_i32, %c0_i32_0 : i32, i32
  }
  func.func @transform_8(%arg0: i32) -> (i32, i32) {
    %c0_i32 = arith.constant 0 : i32
    %c0_i32_0 = arith.constant 0 : i32
    %c0_i32_1 = arith.constant 0 : i32
    return %c0_i32, %c0_i32_0 : i32, i32
  }
  func.func @transform_9(%arg0: i32) -> (i32, i32, i32) {
    %c0_i32 = arith.constant 0 : i32
    %c0_i32_0 = arith.constant 0 : i32
    %c0_i32_1 = arith.constant 0 : i32
    return %arg0, %c0_i32, %c0_i32_0 : i32, i32, i32
  }
  func.func @transform_10(%arg0: i32) -> (i32, i32, i32) {
    %c0_i32 = arith.constant 0 : i32
    %c0_i32_0 = arith.constant 0 : i32
    %c0_i32_1 = arith.constant 0 : i32
    return %arg0, %c0_i32, %c0_i32_0 : i32, i32, i32
  }
  func.func @transform_11(%arg0: i32) -> (i32, i32, i32) {
    %c0_i32 = arith.constant 0 : i32
    %c0_i32_0 = arith.constant 0 : i32
    %c0_i32_1 = arith.constant 0 : i32
    return %arg0, %c0_i32, %c0_i32_0 : i32, i32, i32
  }
}

</mosaic_0001>

<llo_original>
// kernel: repblock_forward.1
$region0: #{repblock_forward.1}
  #allocation0 [shape = 'u32[]', space=smem, size = 0x4, offset = 0x4, fixed_abs, tag = 'smem constant byte address 0x4 - core index']
  #allocation1 [shape = 'u32[144,128]{1,0:T(1,128)}', space=vmem, size = 0x12000, scoped, tag = 'internal scratch']
  %s0 = inlined_call_operand.vmem [shape: f32[2,4,256], index: 0, kind: input, shape index: {}]
  %s1 = inlined_call_operand.vmem [shape: f32[4,36], index: 1, kind: input, shape index: {}]
  %s2 = inlined_call_operand.vmem [shape: f32[4,1], index: 2, kind: input, shape index: {}]
  %s3 = inlined_call_operand.vmem [shape: f32[4,36], index: 3, kind: input, shape index: {}]
  %s4 = inlined_call_operand.vmem [shape: f32[4,1], index: 4, kind: input, shape index: {}]
  %s5 = inlined_call_operand.vmem [shape: f32[4,36], index: 5, kind: input, shape index: {}]
  %s6 = inlined_call_operand.vmem [shape: f32[4,1], index: 6, kind: input, shape index: {}]
  %s7 = inlined_call_operand.vmem [shape: f32[4,36], index: 7, kind: input, shape index: {}]
  %s8 = inlined_call_operand.vmem [shape: f32[4,1], index: 8, kind: input, shape index: {}]
  %s9 = inlined_call_operand.vmem [shape: f32[2,4,256], index: 9, kind: output, shape index: {0}]
  %s10 = inlined_call_operand.vmem [shape: f32[2,4,256], index: 10, kind: output, shape index: {1}]
  %s11 = inlined_call_operand.vmem [shape: f32[2,4,256], index: 11, kind: output, shape index: {2}]
  %12 = xla_tuple %s9, %s10, %s11
  %s13 = sld [smem:[#allocation0]]
  $region85: #{repblock_forward.1} parent=0
    _
  %s15 = ssub.s32 1, %s13
  %s16 = scalar_select 0, %s15, %s13
  loop: start=0, step=1, limit=4
  $region2: #{repblock_forward.1} parent=0 // loop_pre_header
    _
  $region3: #{repblock_forward.1} parent=0 // loop_header
    %s18 = sphi 0, %s22
    %p19 = scmp.ge.s32.totalorder %s18, 4
    %s28 = sphi 0, %s30
    %s31 = sphi 0, %s28
    %s32 = sphi 0, %s31
    %s48 = sphi 0, %s32
    %s52 = sphi 0, %s52
    %s54 = sphi 0, %s52
    %s55 = sphi 0, %s54
    %s69 = sphi 0, %s55
    %s73 = sphi 0, %s73
    %s75 = sphi 0, %s73
    %s76 = sphi 0, %s75
    %s90 = sphi 0, %s76
    %s94 = sphi 0, %s94
    %s96 = sphi 0, %s94
    %s97 = sphi 0, %s96
    %s111 = sphi 0, %s97
    %s115 = sphi 0, %s115
    %s117 = sphi 0, %s115
    %s118 = sphi 0, %s117
    %s132 = sphi 0, %s118
    %s136 = sphi 0, %s136
    %s138 = sphi 0, %s136
    %s139 = sphi 0, %s138
    %s153 = sphi 0, %s139
    %s157 = sphi 0, %s157
    %s159 = sphi 0, %s157
    %s160 = sphi 0, %s159
    %s174 = sphi 0, %s160
    %s178 = sphi 0, %s178
    %s180 = sphi 0, %s178
    %s181 = sphi 0, %s180
    %s195 = sphi 0, %s181
    %s199 = sphi 0, %s199
    %s201 = sphi 0, %s199
    %s202 = sphi 0, %s201
    %s216 = sphi 0, %s202
    %s222 = sphi 0, %s224
    %s225 = sphi 0, %s222
    %s226 = sphi 0, %s225
    %s242 = sphi 0, %s226
    %s248 = sphi 0, %s250
    %s251 = sphi 0, %s248
    %s252 = sphi 0, %s251
    %s268 = sphi 0, %s252
    %s274 = sphi 0, %s276
    %s277 = sphi 0, %s274
    %s278 = sphi 0, %s277
    %s294 = sphi 0, %s278
  $region4: #{repblock_forward.1} parent=0 // loop_header_branch
    %21 = sbr.rel (%p19) target = $region8
  $region5: #{repblock_forward.1} parent=0 // loop_body
    %s23 = ssub.s32 %s18, 1
    %s24 = ssub.s32 %s18, 2
    %s25 = sadd.s32 %s18, 1
    %s26 = ssub.s32 %s18, %s25
    %p27 = scmp.eq.s32.totalorder %s26, 0
    %s29 = sadd.s32 %s28, 1
    %s30 = scalar_select %p27, %s28, %s29
    %p33 = pneg %p27
    %p34 = scmp.eq.s32.totalorder %s18, 1
    %p35 = por %p33, %p34
    %p36 = scmp.ne.s32.totalorder %s28, %s31
    %p37 = scmp.eq.s32.totalorder %s18, 0
    %p38 = por %p36, %p37
    %p39 = scmp.ne.s32.totalorder %s28, %s31
    %p40 = scmp.eq.s32.totalorder %s23, 1
    %p41 = por %p39, %p40
    %p42 = scmp.ne.s32.totalorder %s31, %s32
    %p43 = scmp.eq.s32.totalorder %s23, 0
    %p44 = por %p42, %p43
    %p45 = scmp.ne.s32.totalorder %s31, %s32
    %p46 = scmp.eq.s32.totalorder %s24, 1
    %p47 = por %p45, %p46
    %p49 = scmp.ne.s32.totalorder %s32, %s48
    %p50 = scmp.eq.s32.totalorder %s24, 0
    %p51 = por %p49, %p50
    %s53 = sadd.s32 %s52, 1
    %p56 = scmp.eq.s32.totalorder %s18, 1
    %p57 = scmp.ne.s32.totalorder %s52, %s54
    %p58 = scmp.eq.s32.totalorder %s18, 0
    %p59 = por %p57, %p58
    %p60 = scmp.ne.s32.totalorder %s52, %s54
    %p61 = scmp.eq.s32.totalorder %s23, 1
    %p62 = por %p60, %p61
    %p63 = scmp.ne.s32.totalorder %s54, %s55
    %p64 = scmp.eq.s32.totalorder %s23, 0
    %p65 = por %p63, %p64
    %p66 = scmp.ne.s32.totalorder %s54, %s55
    %p67 = scmp.eq.s32.totalorder %s24, 1
    %p68 = por %p66, %p67
    %p70 = scmp.ne.s32.totalorder %s55, %s69
    %p71 = scmp.eq.s32.totalorder %s24, 0
    %p72 = por %p70, %p71
    %s74 = sadd.s32 %s73, 1
    %p77 = scmp.eq.s32.totalorder %s18, 1
    %p78 = scmp.ne.s32.totalorder %s73, %s75
    %p79 = scmp.eq.s32.totalorder %s18, 0
    %p80 = por %p78, %p79
    %p81 = scmp.ne.s32.totalorder %s73, %s75
    %p82 = scmp.eq.s32.totalorder %s23, 1
    %p83 = por %p81, %p82
    %p84 = scmp.ne.s32.totalorder %s75, %s76
    %p85 = scmp.eq.s32.totalorder %s23, 0
    %p86 = por %p84, %p85
    %p87 = scmp.ne.s32.totalorder %s75, %s76
    %p88 = scmp.eq.s32.totalorder %s24, 1
    %p89 = por %p87, %p88
    %p91 = scmp.ne.s32.totalorder %s76, %s90
    %p92 = scmp.eq.s32.totalorder %s24, 0
    %p93 = por %p91, %p92
    %s95 = sadd.s32 %s94, 1
    %p98 = scmp.eq.s32.totalorder %s18, 1
    %p99 = scmp.ne.s32.totalorder %s94, %s96
    %p100 = scmp.eq.s32.totalorder %s18, 0
    %p101 = por %p99, %p100
    %p102 = scmp.ne.s32.totalorder %s94, %s96
    %p103 = scmp.eq.s32.totalorder %s23, 1
    %p104 = por %p102, %p103
    %p105 = scmp.ne.s32.totalorder %s96, %s97
    %p106 = scmp.eq.s32.totalorder %s23, 0
    %p107 = por %p105, %p106
    %p108 = scmp.ne.s32.totalorder %s96, %s97
    %p109 = scmp.eq.s32.totalorder %s24, 1
    %p110 = por %p108, %p109
    %p112 = scmp.ne.s32.totalorder %s97, %s111
    %p113 = scmp.eq.s32.totalorder %s24, 0
    %p114 = por %p112, %p113
    %s116 = sadd.s32 %s115, 1
    %p119 = scmp.eq.s32.totalorder %s18, 1
    %p120 = scmp.ne.s32.totalorder %s115, %s117
    %p121 = scmp.eq.s32.totalorder %s18, 0
    %p122 = por %p120, %p121
    %p123 = scmp.ne.s32.totalorder %s115, %s117
    %p124 = scmp.eq.s32.totalorder %s23, 1
    %p125 = por %p123, %p124
    %p126 = scmp.ne.s32.totalorder %s117, %s118
    %p127 = scmp.eq.s32.totalorder %s23, 0
    %p128 = por %p126, %p127
    %p129 = scmp.ne.s32.totalorder %s117, %s118
    %p130 = scmp.eq.s32.totalorder %s24, 1
    %p131 = por %p129, %p130
    %p133 = scmp.ne.s32.totalorder %s118, %s132
    %p134 = scmp.eq.s32.totalorder %s24, 0
    %p135 = por %p133, %p134
    %s137 = sadd.s32 %s136, 1
    %p140 = scmp.eq.s32.totalorder %s18, 1
    %p141 = scmp.ne.s32.totalorder %s136, %s138
    %p142 = scmp.eq.s32.totalorder %s18, 0
    %p143 = por %p141, %p142
    %p144 = scmp.ne.s32.totalorder %s136, %s138
    %p145 = scmp.eq.s32.totalorder %s23, 1
    %p146 = por %p144, %p145
    %p147 = scmp.ne.s32.totalorder %s138, %s139
    %p148 = scmp.eq.s32.totalorder %s23, 0
    %p149 = por %p147, %p148
    %p150 = scmp.ne.s32.totalorder %s138, %s139
    %p151 = scmp.eq.s32.totalorder %s24, 1
    %p152 = por %p150, %p151
    %p154 = scmp.ne.s32.totalorder %s139, %s153
    %p155 = scmp.eq.s32.totalorder %s24, 0
    %p156 = por %p154, %p155
    %s158 = sadd.s32 %s157, 1
    %p161 = scmp.eq.s32.totalorder %s18, 1
    %p162 = scmp.ne.s32.totalorder %s157, %s159
    %p163 = scmp.eq.s32.totalorder %s18, 0
    %p164 = por %p162, %p163
    %p165 = scmp.ne.s32.totalorder %s157, %s159
    %p166 = scmp.eq.s32.totalorder %s23, 1
    %p167 = por %p165, %p166
    %p168 = scmp.ne.s32.totalorder %s159, %s160
    %p169 = scmp.eq.s32.totalorder %s23, 0
    %p170 = por %p168, %p169
    %p171 = scmp.ne.s32.totalorder %s159, %s160
    %p172 = scmp.eq.s32.totalorder %s24, 1
    %p173 = por %p171, %p172
    %p175 = scmp.ne.s32.totalorder %s160, %s174
    %p176 = scmp.eq.s32.totalorder %s24, 0
    %p177 = por %p175, %p176
    %s179 = sadd.s32 %s178, 1
    %p182 = scmp.eq.s32.totalorder %s18, 1
    %p183 = scmp.ne.s32.totalorder %s178, %s180
    %p184 = scmp.eq.s32.totalorder %s18, 0
    %p185 = por %p183, %p184
    %p186 = scmp.ne.s32.totalorder %s178, %s180
    %p187 = scmp.eq.s32.totalorder %s23, 1
    %p188 = por %p186, %p187
    %p189 = scmp.ne.s32.totalorder %s180, %s181
    %p190 = scmp.eq.s32.totalorder %s23, 0
    %p191 = por %p189, %p190
    %p192 = scmp.ne.s32.totalorder %s180, %s181
    %p193 = scmp.eq.s32.totalorder %s24, 1
    %p194 = por %p192, %p193
    %p196 = scmp.ne.s32.totalorder %s181, %s195
    %p197 = scmp.eq.s32.totalorder %s24, 0
    %p198 = por %p196, %p197
    %s200 = sadd.s32 %s199, 1
    %p203 = scmp.eq.s32.totalorder %s18, 1
    %p204 = scmp.ne.s32.totalorder %s199, %s201
    %p205 = scmp.eq.s32.totalorder %s18, 0
    %p206 = por %p204, %p205
    %p207 = scmp.ne.s32.totalorder %s199, %s201
    %p208 = scmp.eq.s32.totalorder %s23, 1
    %p209 = por %p207, %p208
    %p210 = scmp.ne.s32.totalorder %s201, %s202
    %p211 = scmp.eq.s32.totalorder %s23, 0
    %p212 = por %p210, %p211
    %p213 = scmp.ne.s32.totalorder %s201, %s202
    %p214 = scmp.eq.s32.totalorder %s24, 1
    %p215 = por %p213, %p214
    %p217 = scmp.ne.s32.totalorder %s202, %s216
    %p218 = scmp.eq.s32.totalorder %s24, 0
    %p219 = por %p217, %p218
    %s220 = ssub.s32 %s18, %s25
    %p221 = scmp.eq.s32.totalorder %s220, 0
    %s223 = sadd.s32 %s222, 1
    %s224 = scalar_select %p221, %s222, %s223
    %p227 = pneg %p221
    %p228 = scmp.eq.s32.totalorder %s18, 1
    %p229 = por %p227, %p228
    %p230 = scmp.ne.s32.totalorder %s222, %s225
    %p231 = scmp.eq.s32.totalorder %s18, 0
    %p232 = por %p230, %p231
    %p233 = scmp.ne.s32.totalorder %s222, %s225
    %p234 = scmp.eq.s32.totalorder %s23, 1
    %p235 = por %p233, %p234
    %p236 = scmp.ne.s32.totalorder %s225, %s226
    %p237 = scmp.eq.s32.totalorder %s23, 0
    %p238 = por %p236, %p237
    %p239 = scmp.ne.s32.totalorder %s225, %s226
    %p240 = scmp.eq.s32.totalorder %s24, 1
    %p241 = por %p239, %p240
    %p243 = scmp.ne.s32.totalorder %s226, %s242
    %p244 = scmp.eq.s32.totalorder %s24, 0
    %p245 = por %p243, %p244
    %s246 = ssub.s32 %s18, %s25
    %p247 = scmp.eq.s32.totalorder %s246, 0
    %s249 = sadd.s32 %s248, 1
    %s250 = scalar_select %p247, %s248, %s249
    %p253 = pneg %p247
    %p254 = scmp.eq.s32.totalorder %s18, 1
    %p255 = por %p253, %p254
    %p256 = scmp.ne.s32.totalorder %s248, %s251
    %p257 = scmp.eq.s32.totalorder %s18, 0
    %p258 = por %p256, %p257
    %p259 = scmp.ne.s32.totalorder %s248, %s251
    %p260 = scmp.eq.s32.totalorder %s23, 1
    %p261 = por %p259, %p260
    %p262 = scmp.ne.s32.totalorder %s251, %s252
    %p263 = scmp.eq.s32.totalorder %s23, 0
    %p264 = por %p262, %p263
    %p265 = scmp.ne.s32.totalorder %s251, %s252
    %p266 = scmp.eq.s32.totalorder %s24, 1
    %p267 = por %p265, %p266
    %p269 = scmp.ne.s32.totalorder %s252, %s268
    %p270 = scmp.eq.s32.totalorder %s24, 0
    %p271 = por %p269, %p270
    %s272 = ssub.s32 %s18, %s25
    %p273 = scmp.eq.s32.totalorder %s272, 0
    %s275 = sadd.s32 %s274, 1
    %s276 = scalar_select %p273, %s274, %s275
    %p279 = pneg %p273
    %p280 = scmp.eq.s32.totalorder %s18, 1
    %p281 = por %p279, %p280
    %p282 = scmp.ne.s32.totalorder %s274, %s277
    %p283 = scmp.eq.s32.totalorder %s18, 0
    %p284 = por %p282, %p283
    %p285 = scmp.ne.s32.totalorder %s274, %s277
    %p286 = scmp.eq.s32.totalorder %s23, 1
    %p287 = por %p285, %p286
    %p288 = scmp.ne.s32.totalorder %s277, %s278
    %p289 = scmp.eq.s32.totalorder %s23, 0
    %p290 = por %p288, %p289
    %p291 = scmp.ne.s32.totalorder %s277, %s278
    %p292 = scmp.eq.s32.totalorder %s24, 1
    %p293 = por %p291, %p292
    %p295 = scmp.ne.s32.totalorder %s278, %s294
    %p296 = scmp.eq.s32.totalorder %s24, 0
    %p297 = por %p295, %p296
    %p298 = scmp.le.s32.totalorder 1, %s18
    %p299 = scmp.lt.s32.totalorder %s18, 3
    %p300 = pnand %p298, %p299
    %p301 = pneg %p300
    // Predicated region
    $region9: #{repblock_forward.1} parent=5 // pred_check
      _
    $region10: #{repblock_forward.1} parent=5 // pred_check_branch
      %303 = sbr.rel (%p300) target = $region12
    $region11: #{repblock_forward.1} parent=5 // pred_region
      %s304 = ssub.s32 %s18, 1
      // Predicated region
      $region13: #{repblock_forward.1} parent=11 // pred_check
        %p305 = pneg %p65
      $region14: #{repblock_forward.1} parent=11 // pred_check_branch
        %307 = sbr.rel (%p305) target = $region16
      $region15: #{repblock_forward.1} parent=11 // pred_region
        _
      $region16: #{repblock_forward.1} parent=11 // pred_fallthru
        _
      // Predicated region
      $region17: #{repblock_forward.1} parent=11 // pred_check
        %p308 = pneg %p86
      $region18: #{repblock_forward.1} parent=11 // pred_check_branch
        %310 = sbr.rel (%p308) target = $region20
      $region19: #{repblock_forward.1} parent=11 // pred_region
        _
      $region20: #{repblock_forward.1} parent=11 // pred_fallthru
        _
      // Predicated region
      $region21: #{repblock_forward.1} parent=11 // pred_check
        %p311 = pneg %p107
      $region22: #{repblock_forward.1} parent=11 // pred_check_branch
        %313 = sbr.rel (%p311) target = $region24
      $region23: #{repblock_forward.1} parent=11 // pred_region
        _
      $region24: #{repblock_forward.1} parent=11 // pred_fallthru
        _
      // Predicated region
      $region25: #{repblock_forward.1} parent=11 // pred_check
        %p314 = pneg %p128
      $region26: #{repblock_forward.1} parent=11 // pred_check_branch
        %316 = sbr.rel (%p314) target = $region28
      $region27: #{repblock_forward.1} parent=11 // pred_region
        _
      $region28: #{repblock_forward.1} parent=11 // pred_fallthru
        _
      // Predicated region
      $region29: #{repblock_forward.1} parent=11 // pred_check
        %p317 = pneg %p149
      $region30: #{repblock_forward.1} parent=11 // pred_check_branch
        %319 = sbr.rel (%p317) target = $region32
      $region31: #{repblock_forward.1} parent=11 // pred_region
        _
      $region32: #{repblock_forward.1} parent=11 // pred_fallthru
        _
      // Predicated region
      $region33: #{repblock_forward.1} parent=11 // pred_check
        %p320 = pneg %p170
      $region34: #{repblock_forward.1} parent=11 // pred_check_branch
        %322 = sbr.rel (%p320) target = $region36
      $region35: #{repblock_forward.1} parent=11 // pred_region
        _
      $region36: #{repblock_forward.1} parent=11 // pred_fallthru
        _
      // Predicated region
      $region37: #{repblock_forward.1} parent=11 // pred_check
        %p323 = pneg %p191
      $region38: #{repblock_forward.1} parent=11 // pred_check_branch
        %325 = sbr.rel (%p323) target = $region40
      $region39: #{repblock_forward.1} parent=11 // pred_region
        _
      $region40: #{repblock_forward.1} parent=11 // pred_fallthru
        _
      // Predicated region
      $region41: #{repblock_forward.1} parent=11 // pred_check
        %p326 = pneg %p212
      $region42: #{repblock_forward.1} parent=11 // pred_check_branch
        %328 = sbr.rel (%p326) target = $region44
      $region43: #{repblock_forward.1} parent=11 // pred_region
        _
      $region44: #{repblock_forward.1} parent=11 // pred_fallthru
        _
    $region12: #{repblock_forward.1} parent=5 // pred_fallthru
      _
    %p329 = scmp.lt.s32.totalorder %s18, 2
    // Predicated region
    $region45: #{repblock_forward.1} parent=5 // pred_check
      %p330 = pneg %p329
    $region46: #{repblock_forward.1} parent=5 // pred_check_branch
      %332 = sbr.rel (%p330) target = $region48
    $region47: #{repblock_forward.1} parent=5 // pred_region
      // Predicated region
      $region49: #{repblock_forward.1} parent=47 // pred_check
        %p333 = pneg %p38
      $region50: #{repblock_forward.1} parent=47 // pred_check_branch
        %335 = sbr.rel (%p333) target = $region52
      $region51: #{repblock_forward.1} parent=47 // pred_region
        %p336 = scmp.lt.s32.totalorder %s18, 1
        %s337 = scalar_select %p336, %s18, 1
        %s338 = smul.addr %s337, 2
        %s339 = smul.addr %s338, 4
        %s340 = scalar_lea.vmem %s0, %s339
      $region52: #{repblock_forward.1} parent=47 // pred_fallthru
        _
    $region48: #{repblock_forward.1} parent=5 // pred_fallthru
      _
    %p341 = scmp.le.s32.totalorder 1, %s18
    %p342 = scmp.lt.s32.totalorder %s18, 3
    %p343 = pnand %p341, %p342
    %p344 = pneg %p343
    // Predicated region
    $region53: #{repblock_forward.1} parent=5 // pred_check
      _
    $region54: #{repblock_forward.1} parent=5 // pred_check_branch
      %346 = sbr.rel (%p343) target = $region56
    $region55: #{repblock_forward.1} parent=5 // pred_region
      %s347 = ssub.s32 %s18, 1
      %p348 = scmp.lt.s32.totalorder %s23, 1
      %s349 = scalar_select %p348, %s23, 1
      %s350 = smul.addr %s349, 2
      %s351 = smul.addr %s350, 4
      %s352 = scalar_lea.vmem %s0, %s351
      %p353 = pneg %p44
      %p354 = pneg %p41
      %p355 = pneg %p65
      %p356 = pneg %p62
      %p357 = pneg %p86
      %p358 = pneg %p83
      %p359 = pneg %p107
      %p360 = pneg %p104
      %p361 = pneg %p128
      %p362 = pneg %p125
      %p363 = pneg %p149
      %p364 = pneg %p146
      %p365 = pneg %p170
      %p366 = pneg %p167
      %p367 = pneg %p191
      %p368 = pneg %p188
      %p369 = pneg %p212
      %p370 = pneg %p209
      %p371 = pneg %p238
      %p372 = pneg %p235
      %p373 = scmp.lt.s32.totalorder %s23, 1
      %s374 = scalar_select %p373, %s23, 1
      %s375 = smul.addr %s374, 2
      %s376 = smul.addr %s375, 4
      %s377 = scalar_lea.vmem %s9, %s376
      %p378 = pneg %p264
      %p379 = pneg %p261
      %p380 = scmp.lt.s32.totalorder %s23, 1
      %s381 = scalar_select %p380, %s23, 1
      %s382 = smul.addr %s381, 2
      %s383 = smul.addr %s382, 4
      %s384 = scalar_lea.vmem %s10, %s383
      %p385 = pneg %p290
      %p386 = pneg %p287
      %p387 = scmp.lt.s32.totalorder %s23, 1
      %s388 = scalar_select %p387, %s23, 1
      %s389 = smul.addr %s388, 2
      %s390 = smul.addr %s389, 4
      %s391 = scalar_lea.vmem %s11, %s390
      %p392 = scmp.lt.s32.totalorder %s23, 1
      %s393 = scalar_select %p392, %s23, 1
      %s394 = smul.addr %s393, 2
      %s395 = smul.addr %s394, 4
      %s396 = scalar_lea.vmem %s0, %s395
      %p397 = scmp.lt.s32.totalorder %s23, 1
      %s398 = scalar_select %p397, %s23, 1
      %s399 = smul.addr %s398, 2
      %s400 = smul.addr %s399, 4
      %s401 = scalar_lea.vmem %s9, %s400
      %p402 = scmp.lt.s32.totalorder %s23, 1
      %s403 = scalar_select %p402, %s23, 1
      %s404 = smul.addr %s403, 2
      %s405 = smul.addr %s404, 4
      %s406 = scalar_lea.vmem %s10, %s405
      %p407 = scmp.lt.s32.totalorder %s23, 1
      %s408 = scalar_select %p407, %s23, 1
      %s409 = smul.addr %s408, 2
      %s410 = smul.addr %s409, 4
      %s411 = scalar_lea.vmem %s11, %s410
      %v412 = vlaneseq
      %v413 = vand.u32 %v412, 127
      %v414 = vadd.s32 %v413, 128
      %v415 = vand.u32 %v413, 15
      %v416 = vand.u32 %v414, 15
      %vm417 = vcmp.ge.s32.totalorder %v415, 1
      %vm418 = vcmp.ge.s32.totalorder %v416, 1
      %vm419 = vcmp.lt.s32.totalorder %v415, 15
      %vm420 = vcmp.lt.s32.totalorder %v416, 15
      %v421 = vld [vmem:[%s396] sm:$0xff]
      %v423 = vcombine.high %v421, %v421
      %424 = vrot.lane.b32.xlu0 %v421, 17
      %v425 = vpop.permute.xlu0 %424
      %426 = vrot.lane.b32.xlu0 %v423, 17
      %v427 = vpop.permute.xlu0 %426
      %vm428 = vcmask 138240
      %v429 = vsel %vm428, %v425, %v427
      %v432 = vsel %vm428, 0.0, %v425
      %v433 = vsel %vm417, 1, 0
      %v434 = vsel %vm418, 1, 0
      %vm435 = vcmp.eq.s32.totalorder %v433, 1
      %vm436 = vcmp.eq.s32.totalorder %v434, 1
      %v437 = vsel %vm435, %v432, 0.0
      %v438 = vsel %vm436, %v429, 0.0
      %439 = vrot.lane.b32.xlu0 %v421, 16
      %v440 = vpop.permute.xlu0 %439
      %441 = vrot.lane.b32.xlu0 %v423, 16
      %v442 = vpop.permute.xlu0 %441
      %vm443 = vcmask 130048
      %v444 = vsel %vm443, %v440, %v442
      %v446 = vsel %vm443, 0.0, %v440
      %447 = vrot.lane.b32.xlu0 %v421, 15
      %v448 = vpop.permute.xlu0 %447
      %449 = vrot.lane.b32.xlu0 %v423, 15
      %v450 = vpop.permute.xlu0 %449
      %vm451 = vcmask 121856
      %v452 = vsel %vm451, %v448, %v450
      %v455 = vsel %vm451, 0.0, %v448
      %v456 = vsel %vm419, 1, 0
      %v457 = vsel %vm420, 1, 0
      %vm458 = vcmp.eq.s32.totalorder %v456, 1
      %vm459 = vcmp.eq.s32.totalorder %v457, 1
      %v460 = vsel %vm458, %v455, 0.0
      %v461 = vsel %vm459, %v452, 0.0
      %462 = vrot.lane.b32.xlu0 %v421, 1
      %v463 = vpop.permute.xlu0 %462
      %464 = vrot.lane.b32.xlu0 %v423, 1
      %v465 = vpop.permute.xlu0 %464
      %vm466 = vcmask 7168
      %v467 = vsel %vm466, %v463, %v465
      %v470 = vsel %vm466, 0.0, %v463
      %v471 = vsel %vm435, %v470, 0.0
      %v472 = vsel %vm436, %v467, 0.0
      %473 = vrot.lane.b32.xlu0 %v421, 127
      %v474 = vpop.permute.xlu0 %473
      %475 = vrot.lane.b32.xlu0 %v423, 127
      %v476 = vpop.permute.xlu0 %475
      %vm477 = vcmask 1039360
      %v478 = vsel %vm477, %v474, %v476
      %v481 = vsel %vm477, %v476, 0.0
      %v482 = vsel %vm458, %v478, 0.0
      %v483 = vsel %vm459, %v481, 0.0
      %484 = vrot.lane.b32.xlu0 %v421, 113
      %v485 = vpop.permute.xlu0 %484
      %486 = vrot.lane.b32.xlu0 %v423, 113
      %v487 = vpop.permute.xlu0 %486
      %vm488 = vcmask 924672
      %v489 = vsel %vm488, %v485, %v487
      %v492 = vsel %vm488, %v487, 0.0
      %v493 = vsel %vm435, %v489, 0.0
      %v494 = vsel %vm436, %v492, 0.0
      %495 = vrot.lane.b32.xlu0 %v421, 112
      %v496 = vpop.permute.xlu0 %495
      %497 = vrot.lane.b32.xlu0 %v423, 112
      %v498 = vpop.permute.xlu0 %497
      %vm499 = vcmask 916480
      %v500 = vsel %vm499, %v496, %v498
      %v502 = vsel %vm499, %v498, 0.0
      %503 = vrot.lane.b32.xlu0 %v421, 111
      %v504 = vpop.permute.xlu0 %503
      %505 = vrot.lane.b32.xlu0 %v423, 111
      %v506 = vpop.permute.xlu0 %505
      %vm507 = vcmask 908288
      %v508 = vsel %vm507, %v504, %v506
      %v511 = vsel %vm507, %v506, 0.0
      %v512 = vsel %vm458, %v508, 0.0
      %v513 = vsel %vm459, %v511, 0.0
      %v515 = vrot.slane %v446, 4
      %v516 = vrot.slane %v444, 4
      %v521 = vrot.slane %v471, 4
      %v522 = vrot.slane %v472, 4
      %v528 = vrot.slane %v482, 4
      %v529 = vrot.slane %v483, 4
      %v533 = vrot.slane %v500, 4
      %v534 = vrot.slane %v502, 4
      %vm537 = vcmask 1043456
      %v538 = vsel %vm537, %v437, %v515
      %v539 = vsel %vm537, %v438, %v516
      %v540 = vsel %vm537, %v460, %v521
      %v541 = vsel %vm537, %v461, %v522
      %v542 = vsel %vm537, %v421, %v528
      %v543 = vsel %vm537, %v423, %v529
      %v544 = vsel %vm537, %v493, %v533
      %v545 = vsel %vm537, %v494, %v534
      %v546 = vld [vmem:[%s1] sm:$0xf]
      %v547 = vld [vmem:[%s2] sm:$0xf]
      %549 = vset.pattern.permute.xlu0 0
      %550 = vperm.xlu0 %549, %v547
      %v551 = vpop.permute.xlu0 %550
      %vm553 = vcmask 293888
      %v555 = vsel %vm553, %v546, 0
      %v558 = vsel %vm537, %v512, 0
      %v561 = vsel %vm537, %v513, 0
      %563 = vmatprep.subr.mxu0 %v539
      %564 = vmatpush1.msra.mxu0 %v538
      %565 = vmatprep.subr.mxu0 %v541
      %566 = vmatpush1.msra.mxu0 %v540
      %567 = vmatprep.subr.mxu0 %v543
      %568 = vmatpush1.msra.mxu0 %v542
      %569 = vmatprep.subr.mxu0 %v545
      %570 = vmatpush1.msra.mxu0 %v544
      %571 = vmatprep.subr.mxu0 %v561
      %572 = vmatpush1.msra.mxu0 %v558
      %573 = vmatprep.subr.mxu0 0.0
      %574 = vmatpush1.msra.mxu0 0.0
      %575 = vmatprep.subr.mxu0 0.0
      %576 = vmatpush1.msra.mxu0 0.0
      %577 = vmatprep.subr.mxu0 0.0
      %578 = vmatpush1.msra.mxu0 0.0
      %579 = vmatprep.subr.mxu0 0.0
      %580 = vmatpush1.msra.mxu0 0.0
      %581 = vmatprep.subr.mxu0 0.0
      %582 = vmatpush1.msra.mxu0 0.0
      %583 = vmatprep.subr.mxu0 0.0
      %584 = vmatpush1.msra.mxu0 0.0
      %585 = vmatprep.subr.mxu0 0.0
      %586 = vmatpush1.msra.mxu0 0.0
      %587 = vmatprep.subr.mxu0 0.0
      %588 = vmatpush1.msra.mxu0 0.0
      %589 = vmatprep.subr.mxu0 0.0
      %590 = vmatpush1.msra.mxu0 0.0
      %591 = vmatprep.subr.mxu0 0.0
      %592 = vmatpush1.msra.mxu0 0.0
      %593 = vmatprep.subr.mxu0 0.0
      %594 = vmatpush1.msra.mxu0 0.0
      %595 = vmatprep.subr.mxu0 0.0
      %596 = vmatpush1.msra.mxu0 0.0
      %597 = vmatprep.subr.mxu0 0.0
      %598 = vmatpush1.msra.mxu0 0.0
      %599 = vmatprep.subr.mxu0 0.0
      %600 = vmatpush1.msra.mxu0 0.0
      %601 = vmatprep.subr.mxu0 0.0
      %602 = vmatpush1.msra.mxu0 0.0
      %603 = vmatprep.subr.mxu0 0.0
      %604 = vmatpush1.msra.mxu0 0.0
      %605 = vmatprep.subr.mxu0 0.0
      %606 = vmatpush1.msra.mxu0 0.0
      %607 = vmatprep.subr.mxu0 0.0
      %608 = vmatpush1.msra.mxu0 0.0
      %609 = vmatprep.subr.mxu0 0.0
      %610 = vmatpush1.msra.mxu0 0.0
      %611 = vmatprep.subr.mxu0 0.0
      %612 = vmatpush1.msra.mxu0 0.0
      %613 = vmatprep.subr.mxu0 0.0
      %614 = vmatpush1.msra.mxu0 0.0
      %615 = vmatprep.subr.mxu0 0.0
      %616 = vmatpush1.msra.mxu0 0.0
      %617 = vmatprep.subr.mxu0 0.0
      %618 = vmatpush1.msra.mxu0 0.0
      %619 = vmatprep.subr.mxu0 0.0
      %620 = vmatpush1.msra.mxu0 0.0
      %621 = vmatprep.subr.mxu0 0.0
      %622 = vmatpush1.msra.mxu0 0.0
      %623 = vmatprep.subr.mxu0 0.0
      %624 = vmatpush1.msra.mxu0 0.0
      %625 = vmatprep.subr.mxu0 0.0
      %626 = vmatpush1.msra.mxu0 0.0
      %627 = vmatprep.mubr.f32.mxu0 0.0
      %628 = vmatmul.mubr.f32.gmra.mrb[0].mxu0 %v555
      %v629 = vpop.f32.mrb[0].mxu0
      %v630 = vadd.f32 %v551, %v629
      %v631 = vpop.f32.mrb[0].mxu0
      %v632 = vadd.f32 %v551, %v631
      %633 = vdwg.mxu0
      %636 = vrot.lane.b32.xlu0 %v630, 17
      %v637 = vpop.permute.xlu0 %636
      %638 = vrot.lane.b32.xlu0 %v632, 17
      %v639 = vpop.permute.xlu0 %638
      %v640 = vsel %vm428, %v637, %v639
      %v643 = vsel %vm428, 0.0, %v637
      %v644 = vsel %vm435, %v643, 0.0
      %v645 = vsel %vm436, %v640, 0.0
      %646 = vrot.lane.b32.xlu0 %v630, 16
      %v647 = vpop.permute.xlu0 %646
      %648 = vrot.lane.b32.xlu0 %v632, 16
      %v649 = vpop.permute.xlu0 %648
      %v650 = vsel %vm443, %v647, %v649
      %v652 = vsel %vm443, 0.0, %v647
      %653 = vrot.lane.b32.xlu0 %v630, 15
      %v654 = vpop.permute.xlu0 %653
      %655 = vrot.lane.b32.xlu0 %v632, 15
      %v656 = vpop.permute.xlu0 %655
      %v657 = vsel %vm451, %v654, %v656
      %v660 = vsel %vm451, 0.0, %v654
      %v661 = vsel %vm458, %v660, 0.0
      %v662 = vsel %vm459, %v657, 0.0
      %663 = vrot.lane.b32.xlu0 %v630, 1
      %v664 = vpop.permute.xlu0 %663
      %665 = vrot.lane.b32.xlu0 %v632, 1
      %v666 = vpop.permute.xlu0 %665
      %v667 = vsel %vm466, %v664, %v666
      %v670 = vsel %vm466, 0.0, %v664
      %v671 = vsel %vm435, %v670, 0.0
      %v672 = vsel %vm436, %v667, 0.0
      %673 = vrot.lane.b32.xlu0 %v630, 127
      %v674 = vpop.permute.xlu0 %673
      %675 = vrot.lane.b32.xlu0 %v632, 127
      %v676 = vpop.permute.xlu0 %675
      %v677 = vsel %vm477, %v674, %v676
      %v680 = vsel %vm477, %v676, 0.0
      %v681 = vsel %vm458, %v677, 0.0
      %v682 = vsel %vm459, %v680, 0.0
      %683 = vrot.lane.b32.xlu0 %v630, 113
      %v684 = vpop.permute.xlu0 %683
      %685 = vrot.lane.b32.xlu0 %v632, 113
      %v686 = vpop.permute.xlu0 %685
      %v687 = vsel %vm488, %v684, %v686
      %v690 = vsel %vm488, %v686, 0.0
      %v691 = vsel %vm435, %v687, 0.0
      %v692 = vsel %vm436, %v690, 0.0
      %693 = vrot.lane.b32.xlu0 %v630, 112
      %v694 = vpop.permute.xlu0 %693
      %695 = vrot.lane.b32.xlu0 %v632, 112
      %v696 = vpop.permute.xlu0 %695
      %v697 = vsel %vm499, %v694, %v696
      %v699 = vsel %vm499, %v696, 0.0
      %700 = vrot.lane.b32.xlu0 %v630, 111
      %v701 = vpop.permute.xlu0 %700
      %702 = vrot.lane.b32.xlu0 %v632, 111
      %v703 = vpop.permute.xlu0 %702
      %v704 = vsel %vm507, %v701, %v703
      %v707 = vsel %vm507, %v703, 0.0
      %v708 = vsel %vm458, %v704, 0.0
      %v709 = vsel %vm459, %v707, 0.0
      %v711 = vrot.slane %v652, 4
      %v712 = vrot.slane %v650, 4
      %v717 = vrot.slane %v671, 4
      %v718 = vrot.slane %v672, 4
      %v723 = vrot.slane %v681, 4
      %v724 = vrot.slane %v682, 4
      %v728 = vrot.slane %v697, 4
      %v729 = vrot.slane %v699, 4
      %v732 = vsel %vm537, %v644, %v711
      %v733 = vsel %vm537, %v645, %v712
      %v734 = vsel %vm537, %v661, %v717
      %v735 = vsel %vm537, %v662, %v718
      %v736 = vsel %vm537, %v630, %v723
      %v737 = vsel %vm537, %v632, %v724
      %v738 = vsel %vm537, %v691, %v728
      %v739 = vsel %vm537, %v692, %v729
      %v740 = vld [vmem:[%s3] sm:$0xf]
      %v741 = vld [vmem:[%s4] sm:$0xf]
      %743 = vset.pattern.permute.xlu0 0
      %744 = vperm.xlu0 %743, %v741
      %v745 = vpop.permute.xlu0 %744
      %v748 = vsel %vm553, %v740, 0
      %v751 = vsel %vm537, %v708, 0
      %v754 = vsel %vm537, %v709, 0
      %756 = vmatprep.subr.mxu0 %v733
      %757 = vmatpush1.msra.mxu0 %v732
      %758 = vmatprep.subr.mxu0 %v735
      %759 = vmatpush1.msra.mxu0 %v734
      %760 = vmatprep.subr.mxu0 %v737
      %761 = vmatpush1.msra.mxu0 %v736
      %762 = vmatprep.subr.mxu0 %v739
      %763 = vmatpush1.msra.mxu0 %v738
      %764 = vmatprep.subr.mxu0 %v754
      %765 = vmatpush1.msra.mxu0 %v751
      %766 = vmatprep.subr.mxu0 0.0
      %767 = vmatpush1.msra.mxu0 0.0
      %768 = vmatprep.subr.mxu0 0.0
      %769 = vmatpush1.msra.mxu0 0.0
      %770 = vmatprep.subr.mxu0 0.0
      %771 = vmatpush1.msra.mxu0 0.0
      %772 = vmatprep.subr.mxu0 0.0
      %773 = vmatpush1.msra.mxu0 0.0
      %774 = vmatprep.subr.mxu0 0.0
      %775 = vmatpush1.msra.mxu0 0.0
      %776 = vmatprep.subr.mxu0 0.0
      %777 = vmatpush1.msra.mxu0 0.0
      %778 = vmatprep.subr.mxu0 0.0
      %779 = vmatpush1.msra.mxu0 0.0
      %780 = vmatprep.subr.mxu0 0.0
      %781 = vmatpush1.msra.mxu0 0.0
      %782 = vmatprep.subr.mxu0 0.0
      %783 = vmatpush1.msra.mxu0 0.0
      %784 = vmatprep.subr.mxu0 0.0
      %785 = vmatpush1.msra.mxu0 0.0
      %786 = vmatprep.subr.mxu0 0.0
      %787 = vmatpush1.msra.mxu0 0.0
      %788 = vmatprep.subr.mxu0 0.0
      %789 = vmatpush1.msra.mxu0 0.0
      %790 = vmatprep.subr.mxu0 0.0
      %791 = vmatpush1.msra.mxu0 0.0
      %792 = vmatprep.subr.mxu0 0.0
      %793 = vmatpush1.msra.mxu0 0.0
      %794 = vmatprep.subr.mxu0 0.0
      %795 = vmatpush1.msra.mxu0 0.0
      %796 = vmatprep.subr.mxu0 0.0
      %797 = vmatpush1.msra.mxu0 0.0
      %798 = vmatprep.subr.mxu0 0.0
      %799 = vmatpush1.msra.mxu0 0.0
      %800 = vmatprep.subr.mxu0 0.0
      %801 = vmatpush1.msra.mxu0 0.0
      %802 = vmatprep.subr.mxu0 0.0
      %803 = vmatpush1.msra.mxu0 0.0
      %804 = vmatprep.subr.mxu0 0.0
      %805 = vmatpush1.msra.mxu0 0.0
      %806 = vmatprep.subr.mxu0 0.0
      %807 = vmatpush1.msra.mxu0 0.0
      %808 = vmatprep.subr.mxu0 0.0
      %809 = vmatpush1.msra.mxu0 0.0
      %810 = vmatprep.subr.mxu0 0.0
      %811 = vmatpush1.msra.mxu0 0.0
      %812 = vmatprep.subr.mxu0 0.0
      %813 = vmatpush1.msra.mxu0 0.0
      %814 = vmatprep.subr.mxu0 0.0
      %815 = vmatpush1.msra.mxu0 0.0
      %816 = vmatprep.subr.mxu0 0.0
      %817 = vmatpush1.msra.mxu0 0.0
      %818 = vmatprep.subr.mxu0 0.0
      %819 = vmatpush1.msra.mxu0 0.0
      %820 = vmatprep.mubr.f32.mxu0 0.0
      %821 = vmatmul.mubr.f32.gmra.mrb[0].mxu0 %v748
      %v822 = vpop.f32.mrb[0].mxu0
      %v823 = vadd.f32 %v745, %v822
      %v824 = vpop.f32.mrb[0].mxu0
      %v825 = vadd.f32 %v745, %v824
      %826 = vdwg.mxu0
      %v827 = vsub.f32 0.0, %v823
      %v828 = vsub.f32 0.0, %v825
      %v829 = vmul.f32 %v827, 1.442695
      %v830 = vpow.pop %v829
      %v831 = vmul.f32 %v828, 1.442695
      %v832 = vpow.pop %v831
      %v833 = vadd.f32 %v830, 1.0
      %v834 = vadd.f32 %v832, 1.0
      %v835 = vrcp.pop %v833
      %v836 = vmul.f32 1.0, %v835
      %v837 = vrcp.pop %v834
      %v838 = vmul.f32 1.0, %v837
      %v839 = vmul.f32 %v823, %v836
      %v840 = vmul.f32 %v825, %v838
      %843 = vrot.lane.b32.xlu0 %v839, 17
      %v844 = vpop.permute.xlu0 %843
      %845 = vrot.lane.b32.xlu0 %v840, 17
      %v846 = vpop.permute.xlu0 %845
      %v847 = vsel %vm428, %v844, %v846
      %v850 = vsel %vm428, 0.0, %v844
      %v851 = vsel %vm435, %v850, 0.0
      %v852 = vsel %vm436, %v847, 0.0
      %853 = vrot.lane.b32.xlu0 %v839, 16
      %v854 = vpop.permute.xlu0 %853
      %855 = vrot.lane.b32.xlu0 %v840, 16
      %v856 = vpop.permute.xlu0 %855
      %v857 = vsel %vm443, %v854, %v856
      %v859 = vsel %vm443, 0.0, %v854
      %860 = vrot.lane.b32.xlu0 %v839, 15
      %v861 = vpop.permute.xlu0 %860
      %862 = vrot.lane.b32.xlu0 %v840, 15
      %v863 = vpop.permute.xlu0 %862
      %v864 = vsel %vm451, %v861, %v863
      %v867 = vsel %vm451, 0.0, %v861
      %v868 = vsel %vm458, %v867, 0.0
      %v869 = vsel %vm459, %v864, 0.0
      %870 = vrot.lane.b32.xlu0 %v839, 1
      %v871 = vpop.permute.xlu0 %870
      %872 = vrot.lane.b32.xlu0 %v840, 1
      %v873 = vpop.permute.xlu0 %872
      %v874 = vsel %vm466, %v871, %v873
      %v877 = vsel %vm466, 0.0, %v871
      %v878 = vsel %vm435, %v877, 0.0
      %v879 = vsel %vm436, %v874, 0.0
      %880 = vrot.lane.b32.xlu0 %v839, 127
      %v881 = vpop.permute.xlu0 %880
      %882 = vrot.lane.b32.xlu0 %v840, 127
      %v883 = vpop.permute.xlu0 %882
      %v884 = vsel %vm477, %v881, %v883
      %v887 = vsel %vm477, %v883, 0.0
      %v888 = vsel %vm458, %v884, 0.0
      %v889 = vsel %vm459, %v887, 0.0
      %890 = vrot.lane.b32.xlu0 %v839, 113
      %v891 = vpop.permute.xlu0 %890
      %892 = vrot.lane.b32.xlu0 %v840, 113
      %v893 = vpop.permute.xlu0 %892
      %v894 = vsel %vm488, %v891, %v893
      %v897 = vsel %vm488, %v893, 0.0
      %v898 = vsel %vm435, %v894, 0.0
      %v899 = vsel %vm436, %v897, 0.0
      %900 = vrot.lane.b32.xlu0 %v839, 112
      %v901 = vpop.permute.xlu0 %900
      %902 = vrot.lane.b32.xlu0 %v840, 112
      %v903 = vpop.permute.xlu0 %902
      %v904 = vsel %vm499, %v901, %v903
      %v906 = vsel %vm499, %v903, 0.0
      %907 = vrot.lane.b32.xlu0 %v839, 111
      %v908 = vpop.permute.xlu0 %907
      %909 = vrot.lane.b32.xlu0 %v840, 111
      %v910 = vpop.permute.xlu0 %909
      %v911 = vsel %vm507, %v908, %v910
      %v914 = vsel %vm507, %v910, 0.0
      %v915 = vsel %vm458, %v911, 0.0
      %v916 = vsel %vm459, %v914, 0.0
      %v918 = vrot.slane %v859, 4
      %v919 = vrot.slane %v857, 4
      %v924 = vrot.slane %v878, 4
      %v925 = vrot.slane %v879, 4
      %v930 = vrot.slane %v888, 4
      %v931 = vrot.slane %v889, 4
      %v935 = vrot.slane %v904, 4
      %v936 = vrot.slane %v906, 4
      %v939 = vsel %vm537, %v851, %v918
      %v940 = vsel %vm537, %v852, %v919
      %v941 = vsel %vm537, %v868, %v924
      %v942 = vsel %vm537, %v869, %v925
      %v943 = vsel %vm537, %v839, %v930
      %v944 = vsel %vm537, %v840, %v931
      %v945 = vsel %vm537, %v898, %v935
      %v946 = vsel %vm537, %v899, %v936
      %v947 = vld [vmem:[%s5] sm:$0xf]
      %v948 = vld [vmem:[%s6] sm:$0xf]
      %950 = vset.pattern.permute.xlu0 0
      %951 = vperm.xlu0 %950, %v948
      %v952 = vpop.permute.xlu0 %951
      %v955 = vsel %vm553, %v947, 0
      %v958 = vsel %vm537, %v915, 0
      %v961 = vsel %vm537, %v916, 0
      %963 = vmatprep.subr.mxu0 %v940
      %964 = vmatpush1.msra.mxu0 %v939
      %965 = vmatprep.subr.mxu0 %v942
      %966 = vmatpush1.msra.mxu0 %v941
      %967 = vmatprep.subr.mxu0 %v944
      %968 = vmatpush1.msra.mxu0 %v943
      %969 = vmatprep.subr.mxu0 %v946
      %970 = vmatpush1.msra.mxu0 %v945
      %971 = vmatprep.subr.mxu0 %v961
      %972 = vmatpush1.msra.mxu0 %v958
      %973 = vmatprep.subr.mxu0 0.0
      %974 = vmatpush1.msra.mxu0 0.0
      %975 = vmatprep.subr.mxu0 0.0
      %976 = vmatpush1.msra.mxu0 0.0
      %977 = vmatprep.subr.mxu0 0.0
      %978 = vmatpush1.msra.mxu0 0.0
      %979 = vmatprep.subr.mxu0 0.0
      %980 = vmatpush1.msra.mxu0 0.0
      %981 = vmatprep.subr.mxu0 0.0
      %982 = vmatpush1.msra.mxu0 0.0
      %983 = vmatprep.subr.mxu0 0.0
      %984 = vmatpush1.msra.mxu0 0.0
      %985 = vmatprep.subr.mxu0 0.0
      %986 = vmatpush1.msra.mxu0 0.0
      %987 = vmatprep.subr.mxu0 0.0
      %988 = vmatpush1.msra.mxu0 0.0
      %989 = vmatprep.subr.mxu0 0.0
      %990 = vmatpush1.msra.mxu0 0.0
      %991 = vmatprep.subr.mxu0 0.0
      %992 = vmatpush1.msra.mxu0 0.0
      %993 = vmatprep.subr.mxu0 0.0
      %994 = vmatpush1.msra.mxu0 0.0
      %995 = vmatprep.subr.mxu0 0.0
      %996 = vmatpush1.msra.mxu0 0.0
      %997 = vmatprep.subr.mxu0 0.0
      %998 = vmatpush1.msra.mxu0 0.0
      %999 = vmatprep.subr.mxu0 0.0
      %1000 = vmatpush1.msra.mxu0 0.0
      %1001 = vmatprep.subr.mxu0 0.0
      %1002 = vmatpush1.msra.mxu0 0.0
      %1003 = vmatprep.subr.mxu0 0.0
      %1004 = vmatpush1.msra.mxu0 0.0
      %1005 = vmatprep.subr.mxu0 0.0
      %1006 = vmatpush1.msra.mxu0 0.0
      %1007 = vmatprep.subr.mxu0 0.0
      %1008 = vmatpush1.msra.mxu0 0.0
      %1009 = vmatprep.subr.mxu0 0.0
      %1010 = vmatpush1.msra.mxu0 0.0
      %1011 = vmatprep.subr.mxu0 0.0
      %1012 = vmatpush1.msra.mxu0 0.0
      %1013 = vmatprep.subr.mxu0 0.0
      %1014 = vmatpush1.msra.mxu0 0.0
      %1015 = vmatprep.subr.mxu0 0.0
      %1016 = vmatpush1.msra.mxu0 0.0
      %1017 = vmatprep.subr.mxu0 0.0
      %1018 = vmatpush1.msra.mxu0 0.0
      %1019 = vmatprep.subr.mxu0 0.0
      %1020 = vmatpush1.msra.mxu0 0.0
      %1021 = vmatprep.subr.mxu0 0.0
      %1022 = vmatpush1.msra.mxu0 0.0
      %1023 = vmatprep.subr.mxu0 0.0
      %1024 = vmatpush1.msra.mxu0 0.0
      %1025 = vmatprep.subr.mxu0 0.0
      %1026 = vmatpush1.msra.mxu0 0.0
      %1027 = vmatprep.mubr.f32.mxu0 0.0
      %1028 = vmatmul.mubr.f32.gmra.mrb[0].mxu0 %v955
      %v1029 = vpop.f32.mrb[0].mxu0
      %v1030 = vadd.f32 %v952, %v1029
      %v1031 = vpop.f32.mrb[0].mxu0
      %v1032 = vadd.f32 %v952, %v1031
      %1033 = vdwg.mxu0
      %v1034 = vsub.f32 0.0, %v1030
      %v1035 = vsub.f32 0.0, %v1032
      %v1036 = vmul.f32 %v1034, 1.442695
      %v1037 = vpow.pop %v1036
      %v1038 = vmul.f32 %v1035, 1.442695
      %v1039 = vpow.pop %v1038
      %v1040 = vadd.f32 %v1037, 1.0
      %v1041 = vadd.f32 %v1039, 1.0
      %v1042 = vrcp.pop %v1040
      %v1043 = vmul.f32 1.0, %v1042
      %v1044 = vrcp.pop %v1041
      %v1045 = vmul.f32 1.0, %v1044
      %v1046 = vmul.f32 %v1030, %v1043
      %v1047 = vmul.f32 %v1032, %v1045
      %1050 = vrot.lane.b32.xlu0 %v1046, 17
      %v1051 = vpop.permute.xlu0 %1050
      %1052 = vrot.lane.b32.xlu0 %v1047, 17
      %v1053 = vpop.permute.xlu0 %1052
      %v1054 = vsel %vm428, %v1051, %v1053
      %v1057 = vsel %vm428, 0.0, %v1051
      %v1058 = vsel %vm435, %v1057, 0.0
      %v1059 = vsel %vm436, %v1054, 0.0
      %1060 = vrot.lane.b32.xlu0 %v1046, 16
      %v1061 = vpop.permute.xlu0 %1060
      %1062 = vrot.lane.b32.xlu0 %v1047, 16
      %v1063 = vpop.permute.xlu0 %1062
      %v1064 = vsel %vm443, %v1061, %v1063
      %v1066 = vsel %vm443, 0.0, %v1061
      %1067 = vrot.lane.b32.xlu0 %v1046, 15
      %v1068 = vpop.permute.xlu0 %1067
      %1069 = vrot.lane.b32.xlu0 %v1047, 15
      %v1070 = vpop.permute.xlu0 %1069
      %v1071 = vsel %vm451, %v1068, %v1070
      %v1074 = vsel %vm451, 0.0, %v1068
      %v1075 = vsel %vm458, %v1074, 0.0
      %v1076 = vsel %vm459, %v1071, 0.0
      %1077 = vrot.lane.b32.xlu0 %v1046, 1
      %v1078 = vpop.permute.xlu0 %1077
      %1079 = vrot.lane.b32.xlu0 %v1047, 1
      %v1080 = vpop.permute.xlu0 %1079
      %v1081 = vsel %vm466, %v1078, %v1080
      %v1084 = vsel %vm466, 0.0, %v1078
      %v1085 = vsel %vm435, %v1084, 0.0
      %v1086 = vsel %vm436, %v1081, 0.0
      %1087 = vrot.lane.b32.xlu0 %v1046, 127
      %v1088 = vpop.permute.xlu0 %1087
      %1089 = vrot.lane.b32.xlu0 %v1047, 127
      %v1090 = vpop.permute.xlu0 %1089
      %v1091 = vsel %vm477, %v1088, %v1090
      %v1094 = vsel %vm477, %v1090, 0.0
      %v1095 = vsel %vm458, %v1091, 0.0
      %v1096 = vsel %vm459, %v1094, 0.0
      %1097 = vrot.lane.b32.xlu0 %v1046, 113
      %v1098 = vpop.permute.xlu0 %1097
      %1099 = vrot.lane.b32.xlu0 %v1047, 113
      %v1100 = vpop.permute.xlu0 %1099
      %v1101 = vsel %vm488, %v1098, %v1100
      %v1104 = vsel %vm488, %v1100, 0.0
      %v1105 = vsel %vm435, %v1101, 0.0
      %v1106 = vsel %vm436, %v1104, 0.0
      %1107 = vrot.lane.b32.xlu0 %v1046, 112
      %v1108 = vpop.permute.xlu0 %1107
      %1109 = vrot.lane.b32.xlu0 %v1047, 112
      %v1110 = vpop.permute.xlu0 %1109
      %v1111 = vsel %vm499, %v1108, %v1110
      %v1113 = vsel %vm499, %v1110, 0.0
      %1114 = vrot.lane.b32.xlu0 %v1046, 111
      %v1115 = vpop.permute.xlu0 %1114
      %1116 = vrot.lane.b32.xlu0 %v1047, 111
      %v1117 = vpop.permute.xlu0 %1116
      %v1118 = vsel %vm507, %v1115, %v1117
      %v1121 = vsel %vm507, %v1117, 0.0
      %v1122 = vsel %vm458, %v1118, 0.0
      %v1123 = vsel %vm459, %v1121, 0.0
      %v1125 = vrot.slane %v1066, 4
      %v1126 = vrot.slane %v1064, 4
      %v1131 = vrot.slane %v1085, 4
      %v1132 = vrot.slane %v1086, 4
      %v1137 = vrot.slane %v1095, 4
      %v1138 = vrot.slane %v1096, 4
      %v1142 = vrot.slane %v1111, 4
      %v1143 = vrot.slane %v1113, 4
      %v1146 = vsel %vm537, %v1058, %v1125
      %v1147 = vsel %vm537, %v1059, %v1126
      %v1148 = vsel %vm537, %v1075, %v1131
      %v1149 = vsel %vm537, %v1076, %v1132
      %v1150 = vsel %vm537, %v1046, %v1137
      %v1151 = vsel %vm537, %v1047, %v1138
      %v1152 = vsel %vm537, %v1105, %v1142
      %v1153 = vsel %vm537, %v1106, %v1143
      %v1154 = vld [vmem:[%s7] sm:$0xf]
      %v1155 = vld [vmem:[%s8] sm:$0xf]
      %1157 = vset.pattern.permute.xlu0 0
      %1158 = vperm.xlu0 %1157, %v1155
      %v1159 = vpop.permute.xlu0 %1158
      %v1162 = vsel %vm553, %v1154, 0
      %v1165 = vsel %vm537, %v1122, 0
      %v1168 = vsel %vm537, %v1123, 0
      %1170 = vmatprep.subr.mxu0 %v1147
      %1171 = vmatpush1.msra.mxu0 %v1146
      %1172 = vmatprep.subr.mxu0 %v1149
      %1173 = vmatpush1.msra.mxu0 %v1148
      %1174 = vmatprep.subr.mxu0 %v1151
      %1175 = vmatpush1.msra.mxu0 %v1150
      %1176 = vmatprep.subr.mxu0 %v1153
      %1177 = vmatpush1.msra.mxu0 %v1152
      %1178 = vmatprep.subr.mxu0 %v1168
      %1179 = vmatpush1.msra.mxu0 %v1165
      %1180 = vmatprep.subr.mxu0 0.0
      %1181 = vmatpush1.msra.mxu0 0.0
      %1182 = vmatprep.subr.mxu0 0.0
      %1183 = vmatpush1.msra.mxu0 0.0
      %1184 = vmatprep.subr.mxu0 0.0
      %1185 = vmatpush1.msra.mxu0 0.0
      %1186 = vmatprep.subr.mxu0 0.0
      %1187 = vmatpush1.msra.mxu0 0.0
      %1188 = vmatprep.subr.mxu0 0.0
      %1189 = vmatpush1.msra.mxu0 0.0
      %1190 = vmatprep.subr.mxu0 0.0
      %1191 = vmatpush1.msra.mxu0 0.0
      %1192 = vmatprep.subr.mxu0 0.0
      %1193 = vmatpush1.msra.mxu0 0.0
      %1194 = vmatprep.subr.mxu0 0.0
      %1195 = vmatpush1.msra.mxu0 0.0
      %1196 = vmatprep.subr.mxu0 0.0
      %1197 = vmatpush1.msra.mxu0 0.0
      %1198 = vmatprep.subr.mxu0 0.0
      %1199 = vmatpush1.msra.mxu0 0.0
      %1200 = vmatprep.subr.mxu0 0.0
      %1201 = vmatpush1.msra.mxu0 0.0
      %1202 = vmatprep.subr.mxu0 0.0
      %1203 = vmatpush1.msra.mxu0 0.0
      %1204 = vmatprep.subr.mxu0 0.0
      %1205 = vmatpush1.msra.mxu0 0.0
      %1206 = vmatprep.subr.mxu0 0.0
      %1207 = vmatpush1.msra.mxu0 0.0
      %1208 = vmatprep.subr.mxu0 0.0
      %1209 = vmatpush1.msra.mxu0 0.0
      %1210 = vmatprep.subr.mxu0 0.0
      %1211 = vmatpush1.msra.mxu0 0.0
      %1212 = vmatprep.subr.mxu0 0.0
      %1213 = vmatpush1.msra.mxu0 0.0
      %1214 = vmatprep.subr.mxu0 0.0
      %1215 = vmatpush1.msra.mxu0 0.0
      %1216 = vmatprep.subr.mxu0 0.0
      %1217 = vmatpush1.msra.mxu0 0.0
      %1218 = vmatprep.subr.mxu0 0.0
      %1219 = vmatpush1.msra.mxu0 0.0
      %1220 = vmatprep.subr.mxu0 0.0
      %1221 = vmatpush1.msra.mxu0 0.0
      %1222 = vmatprep.subr.mxu0 0.0
      %1223 = vmatpush1.msra.mxu0 0.0
      %1224 = vmatprep.subr.mxu0 0.0
      %1225 = vmatpush1.msra.mxu0 0.0
      %1226 = vmatprep.subr.mxu0 0.0
      %1227 = vmatpush1.msra.mxu0 0.0
      %1228 = vmatprep.subr.mxu0 0.0
      %1229 = vmatpush1.msra.mxu0 0.0
      %1230 = vmatprep.subr.mxu0 0.0
      %1231 = vmatpush1.msra.mxu0 0.0
      %1232 = vmatprep.subr.mxu0 0.0
      %1233 = vmatpush1.msra.mxu0 0.0
      %1234 = vmatprep.mubr.f32.mxu0 0.0
      %1235 = vmatmul.mubr.f32.gmra.mrb[0].mxu0 %v1162
      %v1236 = vpop.f32.mrb[0].mxu0
      %v1237 = vadd.f32 %v1159, %v1236
      %v1238 = vpop.f32.mrb[0].mxu0
      %v1239 = vadd.f32 %v1159, %v1238
      %1240 = vdwg.mxu0
      %v1241 = vsub.f32 0.0, %v1237
      %v1242 = vsub.f32 0.0, %v1239
      %v1243 = vmul.f32 %v1241, 1.442695
      %v1244 = vpow.pop %v1243
      %v1245 = vmul.f32 %v1242, 1.442695
      %v1246 = vpow.pop %v1245
      %v1247 = vadd.f32 %v1244, 1.0
      %v1248 = vadd.f32 %v1246, 1.0
      %v1249 = vrcp.pop %v1247
      %v1250 = vmul.f32 1.0, %v1249
      %v1251 = vrcp.pop %v1248
      %v1252 = vmul.f32 1.0, %v1251
      %v1253 = vsub.f32 %v1250, 0.5
      %v1254 = vsub.f32 %v1252, 0.5
      %v1255 = vadd.f32 %v1237, %v630
      %v1256 = vadd.f32 %v1239, %v632
      %v1257 = vmul.f32 %v1255, %v1253
      %v1258 = vmul.f32 %v1256, %v1254
      %v1261 = vcombine.low %v1257, %v1258
      %1263 = vst [vmem:[%s401] sm:$0xff] %v1261
      %v1266 = vcombine.low %v823, %v825
      %1268 = vst [vmem:[%s406] sm:$0xff] %v1266
      %v1271 = vcombine.low %v1253, %v1254
      %1273 = vst [vmem:[%s411] sm:$0xff] %v1271
      %p1274 = scmp.lt.s32.totalorder %s23, 1
      %s1275 = scalar_select %p1274, %s23, 1
      %s1276 = smul.addr %s1275, 2
      %s1277 = smul.addr %s1276, 4
      %s1278 = scalar_lea.vmem %s9, %s1277
      %p1279 = scmp.lt.s32.totalorder %s23, 1
      %s1280 = scalar_select %p1279, %s23, 1
      %s1281 = smul.addr %s1280, 2
      %s1282 = smul.addr %s1281, 4
      %s1283 = scalar_lea.vmem %s10, %s1282
      %p1284 = scmp.lt.s32.totalorder %s23, 1
      %s1285 = scalar_select %p1284, %s23, 1
      %s1286 = smul.addr %s1285, 2
      %s1287 = smul.addr %s1286, 4
      %s1288 = scalar_lea.vmem %s11, %s1287
      // Predicated region
      $region57: #{repblock_forward.1} parent=55 // pred_check
        %p1289 = pneg %p235
      $region58: #{repblock_forward.1} parent=55 // pred_check_branch
        %1291 = sbr.rel (%p1289) target = $region60
      $region59: #{repblock_forward.1} parent=55 // pred_region
        _
      $region60: #{repblock_forward.1} parent=55 // pred_fallthru
        _
      // Predicated region
      $region61: #{repblock_forward.1} parent=55 // pred_check
        %p1292 = pneg %p261
      $region62: #{repblock_forward.1} parent=55 // pred_check_branch
        %1294 = sbr.rel (%p1292) target = $region64
      $region63: #{repblock_forward.1} parent=55 // pred_region
        _
      $region64: #{repblock_forward.1} parent=55 // pred_fallthru
        _
      // Predicated region
      $region65: #{repblock_forward.1} parent=55 // pred_check
        %p1295 = pneg %p287
      $region66: #{repblock_forward.1} parent=55 // pred_check_branch
        %1297 = sbr.rel (%p1295) target = $region68
      $region67: #{repblock_forward.1} parent=55 // pred_region
        _
      $region68: #{repblock_forward.1} parent=55 // pred_fallthru
        _
    $region56: #{repblock_forward.1} parent=5 // pred_fallthru
      _
    %p1298 = scmp.le.s32.totalorder 2, %s18
    // Predicated region
    $region69: #{repblock_forward.1} parent=5 // pred_check
      %p1299 = pneg %p1298
    $region70: #{repblock_forward.1} parent=5 // pred_check_branch
      %1301 = sbr.rel (%p1299) target = $region72
    $region71: #{repblock_forward.1} parent=5 // pred_region
      %s1302 = ssub.s32 %s18, 2
      // Predicated region
      $region73: #{repblock_forward.1} parent=71 // pred_check
        %p1303 = pneg %p241
      $region74: #{repblock_forward.1} parent=71 // pred_check_branch
        %1305 = sbr.rel (%p1303) target = $region76
      $region75: #{repblock_forward.1} parent=71 // pred_region
        %p1306 = scmp.lt.s32.totalorder %s24, 1
        %s1307 = scalar_select %p1306, %s24, 1
        %s1308 = smul.addr %s1307, 2
        %s1309 = smul.addr %s1308, 4
        %s1310 = scalar_lea.vmem %s9, %s1309
      $region76: #{repblock_forward.1} parent=71 // pred_fallthru
        _
      // Predicated region
      $region77: #{repblock_forward.1} parent=71 // pred_check
        %p1311 = pneg %p267
      $region78: #{repblock_forward.1} parent=71 // pred_check_branch
        %1313 = sbr.rel (%p1311) target = $region80
      $region79: #{repblock_forward.1} parent=71 // pred_region
        %p1314 = scmp.lt.s32.totalorder %s24, 1
        %s1315 = scalar_select %p1314, %s24, 1
        %s1316 = smul.addr %s1315, 2
        %s1317 = smul.addr %s1316, 4
        %s1318 = scalar_lea.vmem %s10, %s1317
      $region80: #{repblock_forward.1} parent=71 // pred_fallthru
        _
      // Predicated region
      $region81: #{repblock_forward.1} parent=71 // pred_check
        %p1319 = pneg %p293
      $region82: #{repblock_forward.1} parent=71 // pred_check_branch
        %1321 = sbr.rel (%p1319) target = $region84
      $region83: #{repblock_forward.1} parent=71 // pred_region
        %p1322 = scmp.lt.s32.totalorder %s24, 1
        %s1323 = scalar_select %p1322, %s24, 1
        %s1324 = smul.addr %s1323, 2
        %s1325 = smul.addr %s1324, 4
        %s1326 = scalar_lea.vmem %s11, %s1325
      $region84: #{repblock_forward.1} parent=71 // pred_fallthru
        _
    $region72: #{repblock_forward.1} parent=5 // pred_fallthru
      _
  $region6: #{repblock_forward.1} parent=0 // loop_footer
    %s22 = sadd.s32 1, %s18
  $region7: #{repblock_forward.1} parent=0 // loop_footer_branch
    %17 = sbr.rel target = $region3
  $region8: #{repblock_forward.1} parent=0 // loop_exit
    _

</llo_original>
